<compile_context>
chip_gen: v7x
topology: tpu7x:2x2x1
jax: 0.10.0
libtpu: 0.0.40
codegen_flags: <defaults>
</compile_context>

<pallas_src>
import functools
import math

import jax
import jax.numpy as jnp
from jax.experimental import pallas as pl
from jax.experimental.pallas import tpu as pltpu


# ---------------------------------------------------------------------------
# helpers traced inside the kernel
# ---------------------------------------------------------------------------
def _layer_norm(z, g, b, eps=1e-5):
    mu = jnp.mean(z, axis=-1, keepdims=True)
    var = jnp.mean((z - mu) ** 2, axis=-1, keepdims=True)  # biased, like torch.nn.LayerNorm
    return (z - mu) * jax.lax.rsqrt(var + eps) * g + b


def _bf16(x):
    return x.astype(jnp.bfloat16)


# ---------------------------------------------------------------------------
# Fused forward kernel: one grid step == one batch element (all heads batched)
# ---------------------------------------------------------------------------
def fused_forward_kernel(
    x_ref, pe_ref, headmask_ref, seg_ref,
    wqkv_ref, wo_ref, wf1_ref, wf2_ref, vece_ref, bf1_ref,
    w1h_ref, b1h_ref, w2h_ref, b2h_ref,
    w3_ref, b3_ref, w4_ref, b4_ref,
    o_ref,
    *, num_layers, heads, embed_size,
):
    inv_scale = 1.0 / math.sqrt(embed_size)   # softmax(energy / sqrt(embed_size)) quirk

    # PositionalEncoding quirk reproduced: pe row indexed by *batch* index,
    # broadcast over the sequence axis.
    x = x_ref[0] + pe_ref[0]                  # (S, E) f32

    headmask = headmask_ref[...]              # (H*S, E)   {0,1}: row h*S+t keeps head-h cols
    seg = seg_ref[...]                        # (H*S, H*S) block-diagonal ones (segment sums)

    for l in range(num_layers):
        vec = vece_ref[l]                     # (6, E): [bo, g1, b1, bf2, g2, b2]
        bo, g1, b1 = vec[0:1, :], vec[1:2, :], vec[2:3, :]
        bf2, g2, b2 = vec[3:4, :], vec[4:5, :], vec[5:6, :]

        # ----- multi-head self-attention, every head in single MXU ops -----
        qkv = jnp.dot(_bf16(x), wqkv_ref[l],
                      preferred_element_type=jnp.float32)            # (S, 3E)
        q = qkv[:, :embed_size] * inv_scale
        k = qkv[:, embed_size:2 * embed_size]
        v = qkv[:, 2 * embed_size:]

        # Head-expanded K / V: row h*S + t holds head h's feature slice of position t
        # (other feature columns zeroed), so one matmul computes every head at once.
        k_exp = jnp.concatenate([k] * heads, axis=0) * headmask      # (H*S, E)
        v_exp = jnp.concatenate([v] * heads, axis=0) * headmask      # (H*S, E)

        # energy[s, h*S + t] = <q_h[s], k_h[t]> / sqrt(E)   (scale folded into q)
        energy = jax.lax.dot_general(
            _bf16(q), _bf16(k_exp),
            dimension_numbers=(((1,), (1,)), ((), ())),
            preferred_element_type=jnp.float32)                      # (S, H*S)

        # Segmented softmax over each head's S columns.  The whole-row max is a valid
        # shift for every segment (softmax is shift-invariant per segment).
        m = jnp.max(energy, axis=-1, keepdims=True)
        w = jnp.exp(energy - m)
        denom = jnp.dot(w, seg, preferred_element_type=jnp.float32)  # per-segment sums
        p = w * pl.reciprocal(denom, approx=True)                    # (S, H*S)

        heads_cat = jnp.dot(_bf16(p), _bf16(v_exp),
                            preferred_element_type=jnp.float32)      # (S, E), head-concat
        att = jnp.dot(_bf16(heads_cat), wo_ref[l],
                      preferred_element_type=jnp.float32) + bo       # fc_out

        # x = norm1(attention * query)  (elementwise product, exactly as in the module)
        x1 = _layer_norm(att * x, g1, b1)

        # feed-forward: Linear -> ReLU -> Linear, then norm2 residual
        ff = jnp.dot(_bf16(x1), wf1_ref[l],
                     preferred_element_type=jnp.float32) + bf1_ref[l]
        ff = jnp.maximum(ff, 0.0)
        ff = jnp.dot(_bf16(ff), wf2_ref[l],
                     preferred_element_type=jnp.float32) + bf2
        x = _layer_norm(ff + x1, g2, b2)

    # ----- self.linear : E -> E//2 -> 1  (never leaves VMEM) -----
    h = jnp.dot(x, w1h_ref[...], preferred_element_type=jnp.float32) + b1h_ref[...]
    h = jnp.maximum(h, 0.0)                                          # (S, E//2)
    # h1[0, s] = <h[s], w2h> + b2h  — transpose-free row vector via dot_general
    h1 = jax.lax.dot_general(
        w2h_ref[...], h, dimension_numbers=(((1,), (1,)), ((), ())),
        preferred_element_type=jnp.float32) + b2h_ref[...]           # (1, S)

    # ----- self.linear2 : S -> (S+OW)//2 -> OW, in row space (lane-oriented output) -----
    mid = jnp.dot(h1, w3_ref[...], preferred_element_type=jnp.float32) + b3_ref[...]
    mid = jnp.maximum(mid, 0.0)                                      # (1, mid)
    o_ref[0] = jnp.dot(mid, w4_ref[...],
                       preferred_element_type=jnp.float32) + b4_ref[...]   # (1, OW)


# ---------------------------------------------------------------------------
# Host wrapper: one pallas_call for the whole forward
# ---------------------------------------------------------------------------
def tf_modifikasi_forward(src, params, *, heads, embed_size, num_layers, output_window):
    N, S, E = src.shape
    head_dim = embed_size // heads

    # PositionalEncoding quirk: table indexed by batch index, broadcast over seq.
    pe = params["pe_table"][:N][:, None, :]                          # (N, 1, E)

    # Constant structural masks for the head-batched attention.
    hs = jnp.arange(heads * S) // S                                  # head id of expanded row
    ec = jnp.arange(E) // head_dim                                   # head id of feature col
    headmask = (hs[:, None] == ec[None, :]).astype(jnp.float32)      # (H*S, E)
    seg = (hs[:, None] == hs[None, :]).astype(jnp.float32)           # (H*S, H*S)

    kernel = functools.partial(
        fused_forward_kernel,
        num_layers=num_layers, heads=heads, embed_size=embed_size)

    def full(shape):
        return pl.BlockSpec(shape, lambda n: (0,) * len(shape))

    out = pl.pallas_call(
        kernel,
        out_shape=jax.ShapeDtypeStruct((N, 1, output_window), jnp.float32),
        grid=(N,),
        in_specs=[
            pl.BlockSpec((1, S, E), lambda n: (n, 0, 0)),            # src
            pl.BlockSpec((1, 1, E), lambda n: (n, 0, 0)),            # pe (batch-indexed)
            full((heads * S, E)),                                    # headmask
            full((heads * S, heads * S)),                            # seg
            full(params["wqkv"].shape),
            full(params["wo"].shape),
            full(params["wf1"].shape),
            full(params["wf2"].shape),
            full(params["vecE"].shape),
            full(params["bf1"].shape),
            full(params["w1h"].shape),
            full(params["b1h"].shape),
            full(params["w2h"].shape),
            full(params["b2h"].shape),
            full(params["w3"].shape),
            full(params["b3"].shape),
            full(params["w4"].shape),
            full(params["b4"].shape),
        ],
        out_specs=pl.BlockSpec((1, 1, output_window), lambda n: (n, 0, 0)),
        compiler_params=pltpu.CompilerParams(dimension_semantics=("parallel",)),
    )(
        src, pe, headmask, seg,
        params["wqkv"], params["wo"], params["wf1"], params["wf2"],
        params["vecE"], params["bf1"],
        params["w1h"], params["b1h"], params["w2h"], params["b2h"],
        params["w3"], params["b3"], params["w4"], params["b4"],
    )
    return out[:, 0, :]                                              # (N, output_window)


# ---------------------------------------------------------------------------
# Parameter setup (deterministic, synthetic) + PE table (host-side glue)
# ---------------------------------------------------------------------------
def make_pe(max_len, d_model):
    position = jnp.arange(max_len, dtype=jnp.float32)[:, None]
    div_term = jnp.exp(
        jnp.arange(0, d_model, 2, dtype=jnp.float32) * (-math.log(10000.0) / d_model)
    )
    pe = jnp.zeros((max_len, d_model), jnp.float32)
    pe = pe.at[:, 0::2].set(jnp.sin(position * div_term))
    pe = pe.at[:, 1::2].set(jnp.cos(position * div_term))
    return pe


def init_params(key, embed_size, heads, num_layers, forward_expansion,
                input_window, output_window, max_length):
    head_dim = embed_size // heads
    hidden = forward_expansion * embed_size
    e2 = embed_size // 2
    mid = (input_window + output_window) // 2

    def w(k, shape, scale=0.05):
        return (scale * jax.random.normal(k, shape)).astype(jnp.float32)

    def block_diag(wt):
        # shared (Dh, Dh) head weight -> (E, E) block-diagonal (same Linear on every head)
        bd = jnp.zeros((embed_size, embed_size), jnp.float32)
        for h in range(heads):
            bd = bd.at[h * head_dim:(h + 1) * head_dim,
                       h * head_dim:(h + 1) * head_dim].set(wt)
        return bd

    wqkv, wo, wf1, wf2, vecE, bf1 = [], [], [], [], [], []
    for _ in range(num_layers):
        key, *ks = jax.random.split(key, 8)
        wq_t = w(ks[0], (head_dim, head_dim))          # (in, out): q_h = x_h @ wq_t
        wk_t = w(ks[1], (head_dim, head_dim))
        wv_t = w(ks[2], (head_dim, head_dim))
        wo_t = w(ks[3], (embed_size, embed_size))      # fc_out weight (in, out)
        bo = w(ks[4], (embed_size,))                   # fc_out bias
        wf1_t = w(ks[5], (embed_size, hidden))
        wf2_t = w(ks[6], (hidden, embed_size))

        wqkv.append(jnp.concatenate(
            [block_diag(wq_t), block_diag(wk_t), block_diag(wv_t)], axis=1))  # (E, 3E)
        wo.append(wo_t)
        wf1.append(wf1_t)
        wf2.append(wf2_t)
        vecE.append(jnp.stack([
            bo,
            jnp.ones((embed_size,), jnp.float32),      # norm1 gamma
            jnp.zeros((embed_size,), jnp.float32),     # norm1 beta
            jnp.zeros((embed_size,), jnp.float32),     # FFN b2
            jnp.ones((embed_size,), jnp.float32),      # norm2 gamma
            jnp.zeros((embed_size,), jnp.float32),     # norm2 beta
        ], axis=0))
        bf1.append(jnp.zeros((1, hidden), jnp.float32))

    key, k1, k2, k3, k4 = jax.random.split(key, 5)
    return {
        # transformer layers (big matmul weights stored bf16 for the MXU)
        "wqkv": jnp.stack(wqkv).astype(jnp.bfloat16),  # (L, E, 3E)
        "wo":   jnp.stack(wo).astype(jnp.bfloat16),    # (L, E, E)
        "wf1":  jnp.stack(wf1).astype(jnp.bfloat16),   # (L, E, hidden)
        "wf2":  jnp.stack(wf2).astype(jnp.bfloat16),   # (L, hidden, E)
        "vecE": jnp.stack(vecE),                       # (L, 6, E) f32
        "bf1":  jnp.stack(bf1),                        # (L, 1, hidden) f32
        # self.linear : E -> E//2 -> 1
        "w1h": w(k1, (embed_size, e2)),                # (E, E//2)
        "b1h": jnp.zeros((1, e2), jnp.float32),
        "w2h": w(k2, (1, e2)),                         # (E//2 -> 1) weight as a row
        "b2h": jnp.zeros((1, 1), jnp.float32),
        # self.linear2 : S -> mid -> OW, stored (in, out) for row-space matmuls
        "w3":  w(k3, (input_window, mid)),
        "b3":  jnp.zeros((1, mid), jnp.float32),
        "w4":  w(k4, (mid, output_window)),
        "b4":  jnp.zeros((1, output_window), jnp.float32),
        "pe_table": make_pe(max_length, embed_size),
    }


# ---------------------------------------------------------------------------
if __name__ == "__main__":
    N = 2
    input_window = 8          # seq length seen by linear2's first Linear
    output_window = 4
    embed_size = 32
    heads = 4
    num_layers = 2
    forward_expansion = 4
    max_length = 64

    key = jax.random.PRNGKey(0)
    key, sk = jax.random.split(key)
    src = jax.random.normal(sk, (N, input_window, embed_size), dtype=jnp.float32)

    params = init_params(
        key, embed_size, heads, num_layers, forward_expansion,
        input_window, output_window, max_length,
    )

    out = tf_modifikasi_forward(
        src, params, heads=heads, embed_size=embed_size,
        num_layers=num_layers, output_window=output_window,
    )
    out = jax.block_until_ready(out)
    assert out.shape == (N, output_window), out.shape
    assert bool(jnp.all(jnp.isfinite(out))), "non-finite output"
    print("KERNEL_OK")
</pallas_src>

<mosaic_0001>
module attributes {stable_mosaic.version = 11 : i64} {
  func.func @fused_forward_kernel(%arg0: i32, %arg1: memref<1x8x32xf32, #tpu.memory_space<vmem>>, %arg2: memref<1x1x32xf32, #tpu.memory_space<vmem>>, %arg3: memref<32x32xf32, #tpu.memory_space<vmem>>, %arg4: memref<32x32xf32, #tpu.memory_space<vmem>>, %arg5: memref<2x32x96xbf16, #tpu.memory_space<vmem>>, %arg6: memref<2x32x32xbf16, #tpu.memory_space<vmem>>, %arg7: memref<2x32x128xbf16, #tpu.memory_space<vmem>>, %arg8: memref<2x128x32xbf16, #tpu.memory_space<vmem>>, %arg9: memref<2x6x32xf32, #tpu.memory_space<vmem>>, %arg10: memref<2x1x128xf32, #tpu.memory_space<vmem>>, %arg11: memref<32x16xf32, #tpu.memory_space<vmem>>, %arg12: memref<1x16xf32, #tpu.memory_space<vmem>>, %arg13: memref<1x16xf32, #tpu.memory_space<vmem>>, %arg14: memref<1x1xf32, #tpu.memory_space<vmem>>, %arg15: memref<8x6xf32, #tpu.memory_space<vmem>>, %arg16: memref<1x6xf32, #tpu.memory_space<vmem>>, %arg17: memref<6x4xf32, #tpu.memory_space<vmem>>, %arg18: memref<1x4xf32, #tpu.memory_space<vmem>>, %arg19: memref<1x1x4xf32, #tpu.memory_space<vmem>>) attributes {dimension_semantics = [#tpu.dimension_semantics<parallel>], iteration_bounds = array<i64: 2>, scalar_prefetch = 0 : i64, scratch_operands = 0 : i64, tpu.core_type = #tpu.core_type<tc>, window_params = [{transform_indices = @transform_0, window_bounds = array<i64: 1, 8, 32>}, {transform_indices = @transform_1, window_bounds = array<i64: 1, 1, 32>}, {pipeline_mode = #tpu.pipeline_mode<synchronous>, transform_indices = @transform_2, window_bounds = array<i64: 32, 32>}, {pipeline_mode = #tpu.pipeline_mode<synchronous>, transform_indices = @transform_3, window_bounds = array<i64: 32, 32>}, {pipeline_mode = #tpu.pipeline_mode<synchronous>, transform_indices = @transform_4, window_bounds = array<i64: 2, 32, 96>}, {pipeline_mode = #tpu.pipeline_mode<synchronous>, transform_indices = @transform_5, window_bounds = array<i64: 2, 32, 32>}, {pipeline_mode = #tpu.pipeline_mode<synchronous>, transform_indices = @transform_6, window_bounds = array<i64: 2, 32, 128>}, {pipeline_mode = #tpu.pipeline_mode<synchronous>, transform_indices = @transform_7, window_bounds = array<i64: 2, 128, 32>}, {pipeline_mode = #tpu.pipeline_mode<synchronous>, transform_indices = @transform_8, window_bounds = array<i64: 2, 6, 32>}, {pipeline_mode = #tpu.pipeline_mode<synchronous>, transform_indices = @transform_9, window_bounds = array<i64: 2, 1, 128>}, {pipeline_mode = #tpu.pipeline_mode<synchronous>, transform_indices = @transform_10, window_bounds = array<i64: 32, 16>}, {pipeline_mode = #tpu.pipeline_mode<synchronous>, transform_indices = @transform_11, window_bounds = array<i64: 1, 16>}, {pipeline_mode = #tpu.pipeline_mode<synchronous>, transform_indices = @transform_12, window_bounds = array<i64: 1, 16>}, {pipeline_mode = #tpu.pipeline_mode<synchronous>, transform_indices = @transform_13, window_bounds = array<i64: 1, 1>}, {pipeline_mode = #tpu.pipeline_mode<synchronous>, transform_indices = @transform_14, window_bounds = array<i64: 8, 6>}, {pipeline_mode = #tpu.pipeline_mode<synchronous>, transform_indices = @transform_15, window_bounds = array<i64: 1, 6>}, {pipeline_mode = #tpu.pipeline_mode<synchronous>, transform_indices = @transform_16, window_bounds = array<i64: 6, 4>}, {pipeline_mode = #tpu.pipeline_mode<synchronous>, transform_indices = @transform_17, window_bounds = array<i64: 1, 4>}, {transform_indices = @transform_18, window_bounds = array<i64: 1, 1, 4>}]} {
    %c0 = arith.constant 0 : index
    %c0_0 = arith.constant 0 : index
    %c0_1 = arith.constant 0 : index
    %0 = vector.load %arg1[%c0, %c0_0, %c0_1] : memref<1x8x32xf32, #tpu.memory_space<vmem>>, vector<1x8x32xf32>
    %1 = vector.shape_cast %0 : vector<1x8x32xf32> to vector<8x32xf32>
    %c0_2 = arith.constant 0 : index
    %c0_3 = arith.constant 0 : index
    %c0_4 = arith.constant 0 : index
    %2 = vector.load %arg2[%c0_2, %c0_3, %c0_4] : memref<1x1x32xf32, #tpu.memory_space<vmem>>, vector<1x1x32xf32>
    %3 = vector.shape_cast %2 : vector<1x1x32xf32> to vector<1x32xf32>
    %4 = vector.broadcast %3 : vector<1x32xf32> to vector<8x32xf32>
    %5 = arith.addf %1, %4 : vector<8x32xf32>
    %c0_5 = arith.constant 0 : index
    %c0_6 = arith.constant 0 : index
    %6 = vector.load %arg3[%c0_5, %c0_6] : memref<32x32xf32, #tpu.memory_space<vmem>>, vector<32x32xf32>
    %c0_7 = arith.constant 0 : index
    %c0_8 = arith.constant 0 : index
    %7 = vector.load %arg4[%c0_7, %c0_8] : memref<32x32xf32, #tpu.memory_space<vmem>>, vector<32x32xf32>
    %c0_9 = arith.constant 0 : index
    %c0_10 = arith.constant 0 : index
    %c0_11 = arith.constant 0 : index
    %8 = vector.load %arg9[%c0_9, %c0_10, %c0_11] : memref<2x6x32xf32, #tpu.memory_space<vmem>>, vector<1x6x32xf32>
    %9 = vector.shape_cast %8 : vector<1x6x32xf32> to vector<6x32xf32>
    %10 = vector.extract_strided_slice %9 {offsets = [0, 0], sizes = [1, 32], strides = [1, 1]} : vector<6x32xf32> to vector<1x32xf32>
    %11 = vector.extract_strided_slice %9 {offsets = [1, 0], sizes = [1, 32], strides = [1, 1]} : vector<6x32xf32> to vector<1x32xf32>
    %12 = vector.extract_strided_slice %9 {offsets = [2, 0], sizes = [1, 32], strides = [1, 1]} : vector<6x32xf32> to vector<1x32xf32>
    %13 = vector.extract_strided_slice %9 {offsets = [3, 0], sizes = [1, 32], strides = [1, 1]} : vector<6x32xf32> to vector<1x32xf32>
    %14 = vector.extract_strided_slice %9 {offsets = [4, 0], sizes = [1, 32], strides = [1, 1]} : vector<6x32xf32> to vector<1x32xf32>
    %15 = vector.extract_strided_slice %9 {offsets = [5, 0], sizes = [1, 32], strides = [1, 1]} : vector<6x32xf32> to vector<1x32xf32>
    %16 = arith.truncf %5 : vector<8x32xf32> to vector<8x32xbf16>
    %c0_12 = arith.constant 0 : index
    %c0_13 = arith.constant 0 : index
    %c0_14 = arith.constant 0 : index
    %17 = vector.load %arg5[%c0_12, %c0_13, %c0_14] : memref<2x32x96xbf16, #tpu.memory_space<vmem>>, vector<1x32x96xbf16>
    %18 = vector.shape_cast %17 : vector<1x32x96xbf16> to vector<32x96xbf16>
    %cst = arith.constant dense<0.000000e+00> : vector<8x96xf32>
    %19 = tpu.matmul %16, %18, %cst {dimension_numbers = #tpu.dot_dimension_numbers<[1], [0], [0], [1], [0, 0, 1, 1], [], []>} : vector<8x32xbf16>, vector<32x96xbf16>, vector<8x96xf32> -> vector<8x96xf32>
    %20 = vector.extract_strided_slice %19 {offsets = [0, 0], sizes = [8, 32], strides = [1, 1]} : vector<8x96xf32> to vector<8x32xf32>
    %cst_15 = arith.constant 0.176776692 : f32
    %21 = vector.broadcast %cst_15 : f32 to vector<8x32xf32>
    %22 = arith.mulf %20, %21 : vector<8x32xf32>
    %23 = vector.extract_strided_slice %19 {offsets = [0, 32], sizes = [8, 32], strides = [1, 1]} : vector<8x96xf32> to vector<8x32xf32>
    %24 = vector.extract_strided_slice %19 {offsets = [0, 64], sizes = [8, 32], strides = [1, 1]} : vector<8x96xf32> to vector<8x32xf32>
    %25 = tpu.concatenate %23, %23, %23, %23 in 0 : vector<8x32xf32>, vector<8x32xf32>, vector<8x32xf32>, vector<8x32xf32> -> vector<32x32xf32>
    %26 = arith.mulf %25, %6 : vector<32x32xf32>
    %27 = tpu.concatenate %24, %24, %24, %24 in 0 : vector<8x32xf32>, vector<8x32xf32>, vector<8x32xf32>, vector<8x32xf32> -> vector<32x32xf32>
    %28 = arith.mulf %27, %6 : vector<32x32xf32>
    %29 = arith.truncf %22 : vector<8x32xf32> to vector<8x32xbf16>
    %30 = arith.truncf %26 : vector<32x32xf32> to vector<32x32xbf16>
    %cst_16 = arith.constant dense<0.000000e+00> : vector<8x32xf32>
    %31 = tpu.matmul %29, %30, %cst_16 {dimension_numbers = #tpu.dot_dimension_numbers<[1], [1], [0], [0], [0, 0, 1, 0], [], []>} : vector<8x32xbf16>, vector<32x32xbf16>, vector<8x32xf32> -> vector<8x32xf32>
    %cst_17 = arith.constant dense<0xFF800000> : vector<8xf32>
    %32 = vector.multi_reduction <maximumf>, %31, %cst_17 [1] : vector<8x32xf32> to vector<8xf32>
    %33 = vector.shape_cast %32 : vector<8xf32> to vector<8x1xf32>
    %34 = vector.broadcast %33 : vector<8x1xf32> to vector<8x32xf32>
    %35 = arith.subf %31, %34 : vector<8x32xf32>
    %36 = math.exp %35 : vector<8x32xf32>
    %cst_18 = arith.constant dense<0.000000e+00> : vector<8x32xf32>
    %37 = tpu.matmul %36, %7, %cst_18 {dimension_numbers = #tpu.dot_dimension_numbers<[1], [0], [0], [1], [0, 0, 1, 1], [], []>} : vector<8x32xf32>, vector<32x32xf32>, vector<8x32xf32> -> vector<8x32xf32>
    %38 = tpu.reciprocal %37 {approx = true} : vector<8x32xf32> -> vector<8x32xf32>
    %39 = arith.mulf %36, %38 : vector<8x32xf32>
    %40 = arith.truncf %39 : vector<8x32xf32> to vector<8x32xbf16>
    %41 = arith.truncf %28 : vector<32x32xf32> to vector<32x32xbf16>
    %cst_19 = arith.constant dense<0.000000e+00> : vector<8x32xf32>
    %42 = tpu.matmul %40, %41, %cst_19 {dimension_numbers = #tpu.dot_dimension_numbers<[1], [0], [0], [1], [0, 0, 1, 1], [], []>} : vector<8x32xbf16>, vector<32x32xbf16>, vector<8x32xf32> -> vector<8x32xf32>
    %43 = arith.truncf %42 : vector<8x32xf32> to vector<8x32xbf16>
    %c0_20 = arith.constant 0 : index
    %c0_21 = arith.constant 0 : index
    %c0_22 = arith.constant 0 : index
    %44 = vector.load %arg6[%c0_20, %c0_21, %c0_22] : memref<2x32x32xbf16, #tpu.memory_space<vmem>>, vector<1x32x32xbf16>
    %45 = vector.shape_cast %44 : vector<1x32x32xbf16> to vector<32x32xbf16>
    %cst_23 = arith.constant dense<0.000000e+00> : vector<8x32xf32>
    %46 = tpu.matmul %43, %45, %cst_23 {dimension_numbers = #tpu.dot_dimension_numbers<[1], [0], [0], [1], [0, 0, 1, 1], [], []>} : vector<8x32xbf16>, vector<32x32xbf16>, vector<8x32xf32> -> vector<8x32xf32>
    %47 = vector.broadcast %10 : vector<1x32xf32> to vector<8x32xf32>
    %48 = arith.addf %46, %47 : vector<8x32xf32>
    %49 = arith.mulf %48, %5 : vector<8x32xf32>
    %cst_24 = arith.constant dense<0.000000e+00> : vector<8xf32>
    %50 = vector.multi_reduction <add>, %49, %cst_24 [1] : vector<8x32xf32> to vector<8xf32>
    %51 = vector.shape_cast %50 : vector<8xf32> to vector<8x1xf32>
    %cst_25 = arith.constant 3.200000e+01 : f32
    %52 = vector.broadcast %cst_25 : f32 to vector<8x1xf32>
    %53 = arith.divf %51, %52 : vector<8x1xf32>
    %54 = vector.broadcast %53 : vector<8x1xf32> to vector<8x32xf32>
    %55 = arith.subf %49, %54 : vector<8x32xf32>
    %56 = arith.mulf %55, %55 : vector<8x32xf32>
    %cst_26 = arith.constant dense<0.000000e+00> : vector<8xf32>
    %57 = vector.multi_reduction <add>, %56, %cst_26 [1] : vector<8x32xf32> to vector<8xf32>
    %58 = vector.shape_cast %57 : vector<8xf32> to vector<8x1xf32>
    %cst_27 = arith.constant 3.200000e+01 : f32
    %59 = vector.broadcast %cst_27 : f32 to vector<8x1xf32>
    %60 = arith.divf %58, %59 : vector<8x1xf32>
    %61 = vector.broadcast %53 : vector<8x1xf32> to vector<8x32xf32>
    %62 = arith.subf %49, %61 : vector<8x32xf32>
    %cst_28 = arith.constant 9.99999974E-6 : f32
    %63 = vector.broadcast %cst_28 : f32 to vector<8x1xf32>
    %64 = arith.addf %60, %63 : vector<8x1xf32>
    %65 = math.rsqrt %64 : vector<8x1xf32>
    %66 = vector.broadcast %65 : vector<8x1xf32> to vector<8x32xf32>
    %67 = arith.mulf %62, %66 : vector<8x32xf32>
    %68 = vector.broadcast %11 : vector<1x32xf32> to vector<8x32xf32>
    %69 = arith.mulf %67, %68 : vector<8x32xf32>
    %70 = vector.broadcast %12 : vector<1x32xf32> to vector<8x32xf32>
    %71 = arith.addf %69, %70 : vector<8x32xf32>
    %72 = arith.truncf %71 : vector<8x32xf32> to vector<8x32xbf16>
    %c0_29 = arith.constant 0 : index
    %c0_30 = arith.constant 0 : index
    %c0_31 = arith.constant 0 : index
    %73 = vector.load %arg7[%c0_29, %c0_30, %c0_31] : memref<2x32x128xbf16, #tpu.memory_space<vmem>>, vector<1x32x128xbf16>
    %74 = vector.shape_cast %73 : vector<1x32x128xbf16> to vector<32x128xbf16>
    %cst_32 = arith.constant dense<0.000000e+00> : vector<8x128xf32>
    %75 = tpu.matmul %72, %74, %cst_32 {dimension_numbers = #tpu.dot_dimension_numbers<[1], [0], [0], [1], [0, 0, 1, 1], [], []>} : vector<8x32xbf16>, vector<32x128xbf16>, vector<8x128xf32> -> vector<8x128xf32>
    %c0_33 = arith.constant 0 : index
    %c0_34 = arith.constant 0 : index
    %c0_35 = arith.constant 0 : index
    %76 = vector.load %arg10[%c0_33, %c0_34, %c0_35] : memref<2x1x128xf32, #tpu.memory_space<vmem>>, vector<1x1x128xf32>
    %77 = vector.shape_cast %76 : vector<1x1x128xf32> to vector<1x128xf32>
    %78 = vector.broadcast %77 : vector<1x128xf32> to vector<8x128xf32>
    %79 = arith.addf %75, %78 : vector<8x128xf32>
    %cst_36 = arith.constant 0.000000e+00 : f32
    %80 = vector.broadcast %cst_36 : f32 to vector<8x128xf32>
    %81 = arith.maximumf %79, %80 : vector<8x128xf32>
    %82 = arith.truncf %81 : vector<8x128xf32> to vector<8x128xbf16>
    %c0_37 = arith.constant 0 : index
    %c0_38 = arith.constant 0 : index
    %c0_39 = arith.constant 0 : index
    %83 = vector.load %arg8[%c0_37, %c0_38, %c0_39] : memref<2x128x32xbf16, #tpu.memory_space<vmem>>, vector<1x128x32xbf16>
    %84 = vector.shape_cast %83 : vector<1x128x32xbf16> to vector<128x32xbf16>
    %cst_40 = arith.constant dense<0.000000e+00> : vector<8x32xf32>
    %85 = tpu.matmul %82, %84, %cst_40 {dimension_numbers = #tpu.dot_dimension_numbers<[1], [0], [0], [1], [0, 0, 1, 1], [], []>} : vector<8x128xbf16>, vector<128x32xbf16>, vector<8x32xf32> -> vector<8x32xf32>
    %86 = vector.broadcast %13 : vector<1x32xf32> to vector<8x32xf32>
    %87 = arith.addf %85, %86 : vector<8x32xf32>
    %88 = arith.addf %87, %71 : vector<8x32xf32>
    %cst_41 = arith.constant dense<0.000000e+00> : vector<8xf32>
    %89 = vector.multi_reduction <add>, %88, %cst_41 [1] : vector<8x32xf32> to vector<8xf32>
    %90 = vector.shape_cast %89 : vector<8xf32> to vector<8x1xf32>
    %cst_42 = arith.constant 3.200000e+01 : f32
    %91 = vector.broadcast %cst_42 : f32 to vector<8x1xf32>
    %92 = arith.divf %90, %91 : vector<8x1xf32>
    %93 = vector.broadcast %92 : vector<8x1xf32> to vector<8x32xf32>
    %94 = arith.subf %88, %93 : vector<8x32xf32>
    %95 = arith.mulf %94, %94 : vector<8x32xf32>
    %cst_43 = arith.constant dense<0.000000e+00> : vector<8xf32>
    %96 = vector.multi_reduction <add>, %95, %cst_43 [1] : vector<8x32xf32> to vector<8xf32>
    %97 = vector.shape_cast %96 : vector<8xf32> to vector<8x1xf32>
    %cst_44 = arith.constant 3.200000e+01 : f32
    %98 = vector.broadcast %cst_44 : f32 to vector<8x1xf32>
    %99 = arith.divf %97, %98 : vector<8x1xf32>
    %100 = vector.broadcast %92 : vector<8x1xf32> to vector<8x32xf32>
    %101 = arith.subf %88, %100 : vector<8x32xf32>
    %cst_45 = arith.constant 9.99999974E-6 : f32
    %102 = vector.broadcast %cst_45 : f32 to vector<8x1xf32>
    %103 = arith.addf %99, %102 : vector<8x1xf32>
    %104 = math.rsqrt %103 : vector<8x1xf32>
    %105 = vector.broadcast %104 : vector<8x1xf32> to vector<8x32xf32>
    %106 = arith.mulf %101, %105 : vector<8x32xf32>
    %107 = vector.broadcast %14 : vector<1x32xf32> to vector<8x32xf32>
    %108 = arith.mulf %106, %107 : vector<8x32xf32>
    %109 = vector.broadcast %15 : vector<1x32xf32> to vector<8x32xf32>
    %110 = arith.addf %108, %109 : vector<8x32xf32>
    %c1 = arith.constant 1 : index
    %c0_46 = arith.constant 0 : index
    %c0_47 = arith.constant 0 : index
    %111 = vector.load %arg9[%c1, %c0_46, %c0_47] : memref<2x6x32xf32, #tpu.memory_space<vmem>>, vector<1x6x32xf32>
    %112 = vector.shape_cast %111 : vector<1x6x32xf32> to vector<6x32xf32>
    %113 = vector.extract_strided_slice %112 {offsets = [0, 0], sizes = [1, 32], strides = [1, 1]} : vector<6x32xf32> to vector<1x32xf32>
    %114 = vector.extract_strided_slice %112 {offsets = [1, 0], sizes = [1, 32], strides = [1, 1]} : vector<6x32xf32> to vector<1x32xf32>
    %115 = vector.extract_strided_slice %112 {offsets = [2, 0], sizes = [1, 32], strides = [1, 1]} : vector<6x32xf32> to vector<1x32xf32>
    %116 = vector.extract_strided_slice %112 {offsets = [3, 0], sizes = [1, 32], strides = [1, 1]} : vector<6x32xf32> to vector<1x32xf32>
    %117 = vector.extract_strided_slice %112 {offsets = [4, 0], sizes = [1, 32], strides = [1, 1]} : vector<6x32xf32> to vector<1x32xf32>
    %118 = vector.extract_strided_slice %112 {offsets = [5, 0], sizes = [1, 32], strides = [1, 1]} : vector<6x32xf32> to vector<1x32xf32>
    %119 = arith.truncf %110 : vector<8x32xf32> to vector<8x32xbf16>
    %c1_48 = arith.constant 1 : index
    %c0_49 = arith.constant 0 : index
    %c0_50 = arith.constant 0 : index
    %120 = vector.load %arg5[%c1_48, %c0_49, %c0_50] : memref<2x32x96xbf16, #tpu.memory_space<vmem>>, vector<1x32x96xbf16>
    %121 = vector.shape_cast %120 : vector<1x32x96xbf16> to vector<32x96xbf16>
    %cst_51 = arith.constant dense<0.000000e+00> : vector<8x96xf32>
    %122 = tpu.matmul %119, %121, %cst_51 {dimension_numbers = #tpu.dot_dimension_numbers<[1], [0], [0], [1], [0, 0, 1, 1], [], []>} : vector<8x32xbf16>, vector<32x96xbf16>, vector<8x96xf32> -> vector<8x96xf32>
    %123 = vector.extract_strided_slice %122 {offsets = [0, 0], sizes = [8, 32], strides = [1, 1]} : vector<8x96xf32> to vector<8x32xf32>
    %cst_52 = arith.constant 0.176776692 : f32
    %124 = vector.broadcast %cst_52 : f32 to vector<8x32xf32>
    %125 = arith.mulf %123, %124 : vector<8x32xf32>
    %126 = vector.extract_strided_slice %122 {offsets = [0, 32], sizes = [8, 32], strides = [1, 1]} : vector<8x96xf32> to vector<8x32xf32>
    %127 = vector.extract_strided_slice %122 {offsets = [0, 64], sizes = [8, 32], strides = [1, 1]} : vector<8x96xf32> to vector<8x32xf32>
    %128 = tpu.concatenate %126, %126, %126, %126 in 0 : vector<8x32xf32>, vector<8x32xf32>, vector<8x32xf32>, vector<8x32xf32> -> vector<32x32xf32>
    %129 = arith.mulf %128, %6 : vector<32x32xf32>
    %130 = tpu.concatenate %127, %127, %127, %127 in 0 : vector<8x32xf32>, vector<8x32xf32>, vector<8x32xf32>, vector<8x32xf32> -> vector<32x32xf32>
    %131 = arith.mulf %130, %6 : vector<32x32xf32>
    %132 = arith.truncf %125 : vector<8x32xf32> to vector<8x32xbf16>
    %133 = arith.truncf %129 : vector<32x32xf32> to vector<32x32xbf16>
    %cst_53 = arith.constant dense<0.000000e+00> : vector<8x32xf32>
    %134 = tpu.matmul %132, %133, %cst_53 {dimension_numbers = #tpu.dot_dimension_numbers<[1], [1], [0], [0], [0, 0, 1, 0], [], []>} : vector<8x32xbf16>, vector<32x32xbf16>, vector<8x32xf32> -> vector<8x32xf32>
    %cst_54 = arith.constant dense<0xFF800000> : vector<8xf32>
    %135 = vector.multi_reduction <maximumf>, %134, %cst_54 [1] : vector<8x32xf32> to vector<8xf32>
    %136 = vector.shape_cast %135 : vector<8xf32> to vector<8x1xf32>
    %137 = vector.broadcast %136 : vector<8x1xf32> to vector<8x32xf32>
    %138 = arith.subf %134, %137 : vector<8x32xf32>
    %139 = math.exp %138 : vector<8x32xf32>
    %cst_55 = arith.constant dense<0.000000e+00> : vector<8x32xf32>
    %140 = tpu.matmul %139, %7, %cst_55 {dimension_numbers = #tpu.dot_dimension_numbers<[1], [0], [0], [1], [0, 0, 1, 1], [], []>} : vector<8x32xf32>, vector<32x32xf32>, vector<8x32xf32> -> vector<8x32xf32>
    %141 = tpu.reciprocal %140 {approx = true} : vector<8x32xf32> -> vector<8x32xf32>
    %142 = arith.mulf %139, %141 : vector<8x32xf32>
    %143 = arith.truncf %142 : vector<8x32xf32> to vector<8x32xbf16>
    %144 = arith.truncf %131 : vector<32x32xf32> to vector<32x32xbf16>
    %cst_56 = arith.constant dense<0.000000e+00> : vector<8x32xf32>
    %145 = tpu.matmul %143, %144, %cst_56 {dimension_numbers = #tpu.dot_dimension_numbers<[1], [0], [0], [1], [0, 0, 1, 1], [], []>} : vector<8x32xbf16>, vector<32x32xbf16>, vector<8x32xf32> -> vector<8x32xf32>
    %146 = arith.truncf %145 : vector<8x32xf32> to vector<8x32xbf16>
    %c1_57 = arith.constant 1 : index
    %c0_58 = arith.constant 0 : index
    %c0_59 = arith.constant 0 : index
    %147 = vector.load %arg6[%c1_57, %c0_58, %c0_59] : memref<2x32x32xbf16, #tpu.memory_space<vmem>>, vector<1x32x32xbf16>
    %148 = vector.shape_cast %147 : vector<1x32x32xbf16> to vector<32x32xbf16>
    %cst_60 = arith.constant dense<0.000000e+00> : vector<8x32xf32>
    %149 = tpu.matmul %146, %148, %cst_60 {dimension_numbers = #tpu.dot_dimension_numbers<[1], [0], [0], [1], [0, 0, 1, 1], [], []>} : vector<8x32xbf16>, vector<32x32xbf16>, vector<8x32xf32> -> vector<8x32xf32>
    %150 = vector.broadcast %113 : vector<1x32xf32> to vector<8x32xf32>
    %151 = arith.addf %149, %150 : vector<8x32xf32>
    %152 = arith.mulf %151, %110 : vector<8x32xf32>
    %cst_61 = arith.constant dense<0.000000e+00> : vector<8xf32>
    %153 = vector.multi_reduction <add>, %152, %cst_61 [1] : vector<8x32xf32> to vector<8xf32>
    %154 = vector.shape_cast %153 : vector<8xf32> to vector<8x1xf32>
    %cst_62 = arith.constant 3.200000e+01 : f32
    %155 = vector.broadcast %cst_62 : f32 to vector<8x1xf32>
    %156 = arith.divf %154, %155 : vector<8x1xf32>
    %157 = vector.broadcast %156 : vector<8x1xf32> to vector<8x32xf32>
    %158 = arith.subf %152, %157 : vector<8x32xf32>
    %159 = arith.mulf %158, %158 : vector<8x32xf32>
    %cst_63 = arith.constant dense<0.000000e+00> : vector<8xf32>
    %160 = vector.multi_reduction <add>, %159, %cst_63 [1] : vector<8x32xf32> to vector<8xf32>
    %161 = vector.shape_cast %160 : vector<8xf32> to vector<8x1xf32>
    %cst_64 = arith.constant 3.200000e+01 : f32
    %162 = vector.broadcast %cst_64 : f32 to vector<8x1xf32>
    %163 = arith.divf %161, %162 : vector<8x1xf32>
    %164 = vector.broadcast %156 : vector<8x1xf32> to vector<8x32xf32>
    %165 = arith.subf %152, %164 : vector<8x32xf32>
    %cst_65 = arith.constant 9.99999974E-6 : f32
    %166 = vector.broadcast %cst_65 : f32 to vector<8x1xf32>
    %167 = arith.addf %163, %166 : vector<8x1xf32>
    %168 = math.rsqrt %167 : vector<8x1xf32>
    %169 = vector.broadcast %168 : vector<8x1xf32> to vector<8x32xf32>
    %170 = arith.mulf %165, %169 : vector<8x32xf32>
    %171 = vector.broadcast %114 : vector<1x32xf32> to vector<8x32xf32>
    %172 = arith.mulf %170, %171 : vector<8x32xf32>
    %173 = vector.broadcast %115 : vector<1x32xf32> to vector<8x32xf32>
    %174 = arith.addf %172, %173 : vector<8x32xf32>
    %175 = arith.truncf %174 : vector<8x32xf32> to vector<8x32xbf16>
    %c1_66 = arith.constant 1 : index
    %c0_67 = arith.constant 0 : index
    %c0_68 = arith.constant 0 : index
    %176 = vector.load %arg7[%c1_66, %c0_67, %c0_68] : memref<2x32x128xbf16, #tpu.memory_space<vmem>>, vector<1x32x128xbf16>
    %177 = vector.shape_cast %176 : vector<1x32x128xbf16> to vector<32x128xbf16>
    %cst_69 = arith.constant dense<0.000000e+00> : vector<8x128xf32>
    %178 = tpu.matmul %175, %177, %cst_69 {dimension_numbers = #tpu.dot_dimension_numbers<[1], [0], [0], [1], [0, 0, 1, 1], [], []>} : vector<8x32xbf16>, vector<32x128xbf16>, vector<8x128xf32> -> vector<8x128xf32>
    %c1_70 = arith.constant 1 : index
    %c0_71 = arith.constant 0 : index
    %c0_72 = arith.constant 0 : index
    %179 = vector.load %arg10[%c1_70, %c0_71, %c0_72] : memref<2x1x128xf32, #tpu.memory_space<vmem>>, vector<1x1x128xf32>
    %180 = vector.shape_cast %179 : vector<1x1x128xf32> to vector<1x128xf32>
    %181 = vector.broadcast %180 : vector<1x128xf32> to vector<8x128xf32>
    %182 = arith.addf %178, %181 : vector<8x128xf32>
    %cst_73 = arith.constant 0.000000e+00 : f32
    %183 = vector.broadcast %cst_73 : f32 to vector<8x128xf32>
    %184 = arith.maximumf %182, %183 : vector<8x128xf32>
    %185 = arith.truncf %184 : vector<8x128xf32> to vector<8x128xbf16>
    %c1_74 = arith.constant 1 : index
    %c0_75 = arith.constant 0 : index
    %c0_76 = arith.constant 0 : index
    %186 = vector.load %arg8[%c1_74, %c0_75, %c0_76] : memref<2x128x32xbf16, #tpu.memory_space<vmem>>, vector<1x128x32xbf16>
    %187 = vector.shape_cast %186 : vector<1x128x32xbf16> to vector<128x32xbf16>
    %cst_77 = arith.constant dense<0.000000e+00> : vector<8x32xf32>
    %188 = tpu.matmul %185, %187, %cst_77 {dimension_numbers = #tpu.dot_dimension_numbers<[1], [0], [0], [1], [0, 0, 1, 1], [], []>} : vector<8x128xbf16>, vector<128x32xbf16>, vector<8x32xf32> -> vector<8x32xf32>
    %189 = vector.broadcast %116 : vector<1x32xf32> to vector<8x32xf32>
    %190 = arith.addf %188, %189 : vector<8x32xf32>
    %191 = arith.addf %190, %174 : vector<8x32xf32>
    %cst_78 = arith.constant dense<0.000000e+00> : vector<8xf32>
    %192 = vector.multi_reduction <add>, %191, %cst_78 [1] : vector<8x32xf32> to vector<8xf32>
    %193 = vector.shape_cast %192 : vector<8xf32> to vector<8x1xf32>
    %cst_79 = arith.constant 3.200000e+01 : f32
    %194 = vector.broadcast %cst_79 : f32 to vector<8x1xf32>
    %195 = arith.divf %193, %194 : vector<8x1xf32>
    %196 = vector.broadcast %195 : vector<8x1xf32> to vector<8x32xf32>
    %197 = arith.subf %191, %196 : vector<8x32xf32>
    %198 = arith.mulf %197, %197 : vector<8x32xf32>
    %cst_80 = arith.constant dense<0.000000e+00> : vector<8xf32>
    %199 = vector.multi_reduction <add>, %198, %cst_80 [1] : vector<8x32xf32> to vector<8xf32>
    %200 = vector.shape_cast %199 : vector<8xf32> to vector<8x1xf32>
    %cst_81 = arith.constant 3.200000e+01 : f32
    %201 = vector.broadcast %cst_81 : f32 to vector<8x1xf32>
    %202 = arith.divf %200, %201 : vector<8x1xf32>
    %203 = vector.broadcast %195 : vector<8x1xf32> to vector<8x32xf32>
    %204 = arith.subf %191, %203 : vector<8x32xf32>
    %cst_82 = arith.constant 9.99999974E-6 : f32
    %205 = vector.broadcast %cst_82 : f32 to vector<8x1xf32>
    %206 = arith.addf %202, %205 : vector<8x1xf32>
    %207 = math.rsqrt %206 : vector<8x1xf32>
    %208 = vector.broadcast %207 : vector<8x1xf32> to vector<8x32xf32>
    %209 = arith.mulf %204, %208 : vector<8x32xf32>
    %210 = vector.broadcast %117 : vector<1x32xf32> to vector<8x32xf32>
    %211 = arith.mulf %209, %210 : vector<8x32xf32>
    %212 = vector.broadcast %118 : vector<1x32xf32> to vector<8x32xf32>
    %213 = arith.addf %211, %212 : vector<8x32xf32>
    %c0_83 = arith.constant 0 : index
    %c0_84 = arith.constant 0 : index
    %214 = vector.load %arg11[%c0_83, %c0_84] : memref<32x16xf32, #tpu.memory_space<vmem>>, vector<32x16xf32>
    %cst_85 = arith.constant dense<0.000000e+00> : vector<8x16xf32>
    %215 = tpu.matmul %213, %214, %cst_85 {dimension_numbers = #tpu.dot_dimension_numbers<[1], [0], [0], [1], [0, 0, 1, 1], [], []>} : vector<8x32xf32>, vector<32x16xf32>, vector<8x16xf32> -> vector<8x16xf32>
    %c0_86 = arith.constant 0 : index
    %c0_87 = arith.constant 0 : index
    %216 = vector.load %arg12[%c0_86, %c0_87] : memref<1x16xf32, #tpu.memory_space<vmem>>, vector<1x16xf32>
    %217 = vector.broadcast %216 : vector<1x16xf32> to vector<8x16xf32>
    %218 = arith.addf %215, %217 : vector<8x16xf32>
    %cst_88 = arith.constant 0.000000e+00 : f32
    %219 = vector.broadcast %cst_88 : f32 to vector<8x16xf32>
    %220 = arith.maximumf %218, %219 : vector<8x16xf32>
    %c0_89 = arith.constant 0 : index
    %c0_90 = arith.constant 0 : index
    %221 = vector.load %arg13[%c0_89, %c0_90] : memref<1x16xf32, #tpu.memory_space<vmem>>, vector<1x16xf32>
    %cst_91 = arith.constant dense<0.000000e+00> : vector<1x8xf32>
    %222 = tpu.matmul %221, %220, %cst_91 {dimension_numbers = #tpu.dot_dimension_numbers<[1], [1], [0], [0], [0, 0, 1, 0], [], []>} : vector<1x16xf32>, vector<8x16xf32>, vector<1x8xf32> -> vector<1x8xf32>
    %c0_92 = arith.constant 0 : index
    %c0_93 = arith.constant 0 : index
    %223 = vector.load %arg14[%c0_92, %c0_93] : memref<1x1xf32, #tpu.memory_space<vmem>>, vector<1x1xf32>
    %224 = vector.broadcast %223 : vector<1x1xf32> to vector<1x8xf32>
    %225 = arith.addf %222, %224 : vector<1x8xf32>
    %c0_94 = arith.constant 0 : index
    %c0_95 = arith.constant 0 : index
    %226 = vector.load %arg15[%c0_94, %c0_95] : memref<8x6xf32, #tpu.memory_space<vmem>>, vector<8x6xf32>
    %cst_96 = arith.constant dense<0.000000e+00> : vector<1x6xf32>
    %227 = tpu.matmul %225, %226, %cst_96 {dimension_numbers = #tpu.dot_dimension_numbers<[1], [0], [0], [1], [0, 0, 1, 1], [], []>} : vector<1x8xf32>, vector<8x6xf32>, vector<1x6xf32> -> vector<1x6xf32>
    %c0_97 = arith.constant 0 : index
    %c0_98 = arith.constant 0 : index
    %228 = vector.load %arg16[%c0_97, %c0_98] : memref<1x6xf32, #tpu.memory_space<vmem>>, vector<1x6xf32>
    %229 = arith.addf %227, %228 : vector<1x6xf32>
    %cst_99 = arith.constant 0.000000e+00 : f32
    %230 = vector.broadcast %cst_99 : f32 to vector<1x6xf32>
    %231 = arith.maximumf %229, %230 : vector<1x6xf32>
    %c0_100 = arith.constant 0 : index
    %c0_101 = arith.constant 0 : index
    %232 = vector.load %arg17[%c0_100, %c0_101] : memref<6x4xf32, #tpu.memory_space<vmem>>, vector<6x4xf32>
    %cst_102 = arith.constant dense<0.000000e+00> : vector<1x4xf32>
    %233 = tpu.matmul %231, %232, %cst_102 {dimension_numbers = #tpu.dot_dimension_numbers<[1], [0], [0], [1], [0, 0, 1, 1], [], []>} : vector<1x6xf32>, vector<6x4xf32>, vector<1x4xf32> -> vector<1x4xf32>
    %c0_103 = arith.constant 0 : index
    %c0_104 = arith.constant 0 : index
    %234 = vector.load %arg18[%c0_103, %c0_104] : memref<1x4xf32, #tpu.memory_space<vmem>>, vector<1x4xf32>
    %235 = arith.addf %233, %234 : vector<1x4xf32>
    %c0_105 = arith.constant 0 : index
    %c0_106 = arith.constant 0 : index
    %c0_107 = arith.constant 0 : index
    %236 = vector.load %arg19[%c0_105, %c0_106, %c0_107] : memref<1x1x4xf32, #tpu.memory_space<vmem>>, vector<1x1x4xf32>
    %237 = vector.shape_cast %236 : vector<1x1x4xf32> to vector<1x4xf32>
    %238 = vector.shape_cast %235 : vector<1x4xf32> to vector<1x1x4xf32>
    tpu.vector_store %arg19[%c0_105, %c0_106, %c0_107], %238 {strides = array<i32>} : memref<1x1x4xf32, #tpu.memory_space<vmem>>, vector<1x1x4xf32>,
    return
  }
  func.func @transform_0(%arg0: i32) -> (i32, i32, i32) {
    %c0_i32 = arith.constant 0 : i32
    %c0_i32_0 = arith.constant 0 : i32
    %c0_i32_1 = arith.constant 0 : i32
    return %arg0, %c0_i32, %c0_i32_0 : i32, i32, i32
  }
  func.func @transform_1(%arg0: i32) -> (i32, i32, i32) {
    %c0_i32 = arith.constant 0 : i32
    %c0_i32_0 = arith.constant 0 : i32
    %c0_i32_1 = arith.constant 0 : i32
    return %arg0, %c0_i32, %c0_i32_0 : i32, i32, i32
  }
  func.func @transform_2(%arg0: i32) -> (i32, i32) {
    %c0_i32 = arith.constant 0 : i32
    %c0_i32_0 = arith.constant 0 : i32
    %c0_i32_1 = arith.constant 0 : i32
    return %c0_i32, %c0_i32_0 : i32, i32
  }
  func.func @transform_3(%arg0: i32) -> (i32, i32) {
    %c0_i32 = arith.constant 0 : i32
    %c0_i32_0 = arith.constant 0 : i32
    %c0_i32_1 = arith.constant 0 : i32
    return %c0_i32, %c0_i32_0 : i32, i32
  }
  func.func @transform_4(%arg0: i32) -> (i32, i32, i32) {
    %c0_i32 = arith.constant 0 : i32
    %c0_i32_0 = arith.constant 0 : i32
    %c0_i32_1 = arith.constant 0 : i32
    %c0_i32_2 = arith.constant 0 : i32
    return %c0_i32, %c0_i32_0, %c0_i32_1 : i32, i32, i32
  }
  func.func @transform_5(%arg0: i32) -> (i32, i32, i32) {
    %c0_i32 = arith.constant 0 : i32
    %c0_i32_0 = arith.constant 0 : i32
    %c0_i32_1 = arith.constant 0 : i32
    %c0_i32_2 = arith.constant 0 : i32
    return %c0_i32, %c0_i32_0, %c0_i32_1 : i32, i32, i32
  }
  func.func @transform_6(%arg0: i32) -> (i32, i32, i32) {
    %c0_i32 = arith.constant 0 : i32
    %c0_i32_0 = arith.constant 0 : i32
    %c0_i32_1 = arith.constant 0 : i32
    %c0_i32_2 = arith.constant 0 : i32
    return %c0_i32, %c0_i32_0, %c0_i32_1 : i32, i32, i32
  }
  func.func @transform_7(%arg0: i32) -> (i32, i32, i32) {
    %c0_i32 = arith.constant 0 : i32
    %c0_i32_0 = arith.constant 0 : i32
    %c0_i32_1 = arith.constant 0 : i32
    %c0_i32_2 = arith.constant 0 : i32
    return %c0_i32, %c0_i32_0, %c0_i32_1 : i32, i32, i32
  }
  func.func @transform_8(%arg0: i32) -> (i32, i32, i32) {
    %c0_i32 = arith.constant 0 : i32
    %c0_i32_0 = arith.constant 0 : i32
    %c0_i32_1 = arith.constant 0 : i32
    %c0_i32_2 = arith.constant 0 : i32
    return %c0_i32, %c0_i32_0, %c0_i32_1 : i32, i32, i32
  }
  func.func @transform_9(%arg0: i32) -> (i32, i32, i32) {
    %c0_i32 = arith.constant 0 : i32
    %c0_i32_0 = arith.constant 0 : i32
    %c0_i32_1 = arith.constant 0 : i32
    %c0_i32_2 = arith.constant 0 : i32
    return %c0_i32, %c0_i32_0, %c0_i32_1 : i32, i32, i32
  }
  func.func @transform_10(%arg0: i32) -> (i32, i32) {
    %c0_i32 = arith.constant 0 : i32
    %c0_i32_0 = arith.constant 0 : i32
    %c0_i32_1 = arith.constant 0 : i32
    return %c0_i32, %c0_i32_0 : i32, i32
  }
  func.func @transform_11(%arg0: i32) -> (i32, i32) {
    %c0_i32 = arith.constant 0 : i32
    %c0_i32_0 = arith.constant 0 : i32
    %c0_i32_1 = arith.constant 0 : i32
    return %c0_i32, %c0_i32_0 : i32, i32
  }
  func.func @transform_12(%arg0: i32) -> (i32, i32) {
    %c0_i32 = arith.constant 0 : i32
    %c0_i32_0 = arith.constant 0 : i32
    %c0_i32_1 = arith.constant 0 : i32
    return %c0_i32, %c0_i32_0 : i32, i32
  }
  func.func @transform_13(%arg0: i32) -> (i32, i32) {
    %c0_i32 = arith.constant 0 : i32
    %c0_i32_0 = arith.constant 0 : i32
    %c0_i32_1 = arith.constant 0 : i32
    return %c0_i32, %c0_i32_0 : i32, i32
  }
  func.func @transform_14(%arg0: i32) -> (i32, i32) {
    %c0_i32 = arith.constant 0 : i32
    %c0_i32_0 = arith.constant 0 : i32
    %c0_i32_1 = arith.constant 0 : i32
    return %c0_i32, %c0_i32_0 : i32, i32
  }
  func.func @transform_15(%arg0: i32) -> (i32, i32) {
    %c0_i32 = arith.constant 0 : i32
    %c0_i32_0 = arith.constant 0 : i32
    %c0_i32_1 = arith.constant 0 : i32
    return %c0_i32, %c0_i32_0 : i32, i32
  }
  func.func @transform_16(%arg0: i32) -> (i32, i32) {
    %c0_i32 = arith.constant 0 : i32
    %c0_i32_0 = arith.constant 0 : i32
    %c0_i32_1 = arith.constant 0 : i32
    return %c0_i32, %c0_i32_0 : i32, i32
  }
  func.func @transform_17(%arg0: i32) -> (i32, i32) {
    %c0_i32 = arith.constant 0 : i32
    %c0_i32_0 = arith.constant 0 : i32
    %c0_i32_1 = arith.constant 0 : i32
    return %c0_i32, %c0_i32_0 : i32, i32
  }
  func.func @transform_18(%arg0: i32) -> (i32, i32, i32) {
    %c0_i32 = arith.constant 0 : i32
    %c0_i32_0 = arith.constant 0 : i32
    %c0_i32_1 = arith.constant 0 : i32
    return %arg0, %c0_i32, %c0_i32_0 : i32, i32, i32
  }
}

</mosaic_0001>

<llo_original>
// kernel: tpu_custom_call.1
$region0: #{tpu_custom_call.1}
  #allocation0 [shape = 'u32[]', space=smem, size = 0x4, offset = 0x4, fixed_abs, tag = 'smem constant byte address 0x4 - core index']
  #allocation1 [shape = 'u32[144,128]{1,0:T(1,128)}', space=vmem, size = 0x12000, scoped, tag = 'internal scratch']
  #allocation2 [shape = 'f32[1,1]{1,0:T(1,128)S(1)}', space=vmem, size = 0x200, scoped, tag = 'scoped memory for tpu_custom_call.1']
  %s0 = inlined_call_operand.vmem [shape: f32[2,8,32], index: 0, kind: input, shape index: {}]
  %s1 = inlined_call_operand.vmem [shape: f32[2,1,32], index: 1, kind: input, shape index: {}]
  %s2 = inlined_call_operand.vmem [shape: f32[32,32], index: 2, kind: input, shape index: {}]
  %s3 = inlined_call_operand.vmem [shape: f32[32,32], index: 3, kind: input, shape index: {}]
  %s4 = inlined_call_operand.vmem [shape: bf16[2,32,96], index: 4, kind: input, shape index: {}]
  %s5 = inlined_call_operand.vmem [shape: bf16[2,32,32], index: 5, kind: input, shape index: {}]
  %s6 = inlined_call_operand.vmem [shape: bf16[2,32,128], index: 6, kind: input, shape index: {}]
  %s7 = inlined_call_operand.vmem [shape: bf16[2,128,32], index: 7, kind: input, shape index: {}]
  %s8 = inlined_call_operand.vmem [shape: f32[2,6,32], index: 8, kind: input, shape index: {}]
  %s9 = inlined_call_operand.vmem [shape: f32[2,1,128], index: 9, kind: input, shape index: {}]
  %s10 = inlined_call_operand.vmem [shape: f32[32,16], index: 10, kind: input, shape index: {}]
  %s11 = inlined_call_operand.vmem [shape: f32[1,16], index: 11, kind: input, shape index: {}]
  %s12 = inlined_call_operand.vmem [shape: f32[1,16], index: 12, kind: input, shape index: {}]
  %s13 = inlined_call_operand.<no memory space> [shape: f32[1,1], index: 13, kind: input, shape index: {}]
  %s14 = inlined_call_operand.vmem [shape: f32[8,6], index: 14, kind: input, shape index: {}]
  %s15 = inlined_call_operand.vmem [shape: f32[1,6], index: 15, kind: input, shape index: {}]
  %s16 = inlined_call_operand.vmem [shape: f32[6,4], index: 16, kind: input, shape index: {}]
  %s17 = inlined_call_operand.vmem [shape: f32[1,4], index: 17, kind: input, shape index: {}]
  %s18 = inlined_call_operand.hbm [shape: f32[2,1,4], index: 18, kind: output, shape index: {}]
  %s19 = sld [smem:[#allocation0]]
  $region105: #{tpu_custom_call.1} parent=0
    _
  %s21 = ssub.s32 1, %s19
  %s22 = scalar_select 0, %s21, %s19
  %v23 = vstv %s13
  %24 = vst [vmem:[#allocation2] sm:$0x1] %v23
  $region1: #{tpu_custom_call.1} parent=0
    #allocation3 [shape = 'u8[1024]{0}', space=vmem, size = 0x400, scoped, tag = 'output window, operand 0']
    #allocation4 [shape = 's32[2]{0}', space=sflag, size = 0x8, scoped, tag = 'scoped memory for tpu_custom_call.1']
    %25 = vsyncpa [#allocation4], 0
    %s26 = scalar_lea.sflag [#allocation4], 1
    %27 = vsyncpa %s26, 0
    loop: start=0, step=1, limit=4
    $region2: #{tpu_custom_call.1} parent=1 // loop_pre_header
      _
    $region3: #{tpu_custom_call.1} parent=1 // loop_header
      %s29 = sphi 0, %s33
      %p30 = scmp.ge.s32.totalorder %s29, 4
      %s39 = sphi 0, %s41
      %s42 = sphi 0, %s39
      %s43 = sphi 0, %s42
      %s59 = sphi 0, %s43
      %s65 = sphi 0, %s67
      %s68 = sphi 0, %s65
      %s69 = sphi 0, %s68
      %s85 = sphi 0, %s69
      %s89 = sphi 0, %s89
      %s91 = sphi 0, %s89
      %s92 = sphi 0, %s91
      %s106 = sphi 0, %s92
      %s110 = sphi 0, %s110
      %s112 = sphi 0, %s110
      %s113 = sphi 0, %s112
      %s127 = sphi 0, %s113
      %s131 = sphi 0, %s131
      %s133 = sphi 0, %s131
      %s134 = sphi 0, %s133
      %s148 = sphi 0, %s134
      %s152 = sphi 0, %s152
      %s154 = sphi 0, %s152
      %s155 = sphi 0, %s154
      %s169 = sphi 0, %s155
      %s173 = sphi 0, %s173
      %s175 = sphi 0, %s173
      %s176 = sphi 0, %s175
      %s190 = sphi 0, %s176
      %s194 = sphi 0, %s194
      %s196 = sphi 0, %s194
      %s197 = sphi 0, %s196
      %s211 = sphi 0, %s197
      %s215 = sphi 0, %s215
      %s217 = sphi 0, %s215
      %s218 = sphi 0, %s217
      %s232 = sphi 0, %s218
      %s236 = sphi 0, %s236
      %s238 = sphi 0, %s236
      %s239 = sphi 0, %s238
      %s253 = sphi 0, %s239
      %s257 = sphi 0, %s257
      %s259 = sphi 0, %s257
      %s260 = sphi 0, %s259
      %s274 = sphi 0, %s260
      %s278 = sphi 0, %s278
      %s280 = sphi 0, %s278
      %s281 = sphi 0, %s280
      %s295 = sphi 0, %s281
      %s299 = sphi 0, %s299
      %s301 = sphi 0, %s299
      %s302 = sphi 0, %s301
      %s316 = sphi 0, %s302
      %s320 = sphi 0, %s320
      %s322 = sphi 0, %s320
      %s323 = sphi 0, %s322
      %s337 = sphi 0, %s323
      %s341 = sphi 0, %s341
      %s343 = sphi 0, %s341
      %s344 = sphi 0, %s343
      %s358 = sphi 0, %s344
      %s362 = sphi 0, %s362
      %s364 = sphi 0, %s362
      %s365 = sphi 0, %s364
      %s379 = sphi 0, %s365
      %s383 = sphi 0, %s383
      %s385 = sphi 0, %s383
      %s386 = sphi 0, %s385
      %s400 = sphi 0, %s386
      %s404 = sphi 0, %s404
      %s406 = sphi 0, %s404
      %s407 = sphi 0, %s406
      %s421 = sphi 0, %s407
      %s427 = sphi 0, %s429
      %s430 = sphi 0, %s427
      %s431 = sphi 0, %s430
      %s447 = sphi 0, %s431
    $region4: #{tpu_custom_call.1} parent=1 // loop_header_branch
      %32 = sbr.rel (%p30) target = $region8
    $region5: #{tpu_custom_call.1} parent=1 // loop_body
      %s34 = ssub.s32 %s29, 1
      %s35 = ssub.s32 %s29, 2
      %s36 = sadd.s32 %s29, 1
      %s37 = ssub.s32 %s29, %s36
      %p38 = scmp.eq.s32.totalorder %s37, 0
      %s40 = sadd.s32 %s39, 1
      %s41 = scalar_select %p38, %s39, %s40
      %p44 = pneg %p38
      %p45 = scmp.eq.s32.totalorder %s29, 1
      %p46 = por %p44, %p45
      %p47 = scmp.ne.s32.totalorder %s39, %s42
      %p48 = scmp.eq.s32.totalorder %s29, 0
      %p49 = por %p47, %p48
      %p50 = scmp.ne.s32.totalorder %s39, %s42
      %p51 = scmp.eq.s32.totalorder %s34, 1
      %p52 = por %p50, %p51
      %p53 = scmp.ne.s32.totalorder %s42, %s43
      %p54 = scmp.eq.s32.totalorder %s34, 0
      %p55 = por %p53, %p54
      %p56 = scmp.ne.s32.totalorder %s42, %s43
      %p57 = scmp.eq.s32.totalorder %s35, 1
      %p58 = por %p56, %p57
      %p60 = scmp.ne.s32.totalorder %s43, %s59
      %p61 = scmp.eq.s32.totalorder %s35, 0
      %p62 = por %p60, %p61
      %s63 = ssub.s32 %s29, %s36
      %p64 = scmp.eq.s32.totalorder %s63, 0
      %s66 = sadd.s32 %s65, 1
      %s67 = scalar_select %p64, %s65, %s66
      %p70 = pneg %p64
      %p71 = scmp.eq.s32.totalorder %s29, 1
      %p72 = por %p70, %p71
      %p73 = scmp.ne.s32.totalorder %s65, %s68
      %p74 = scmp.eq.s32.totalorder %s29, 0
      %p75 = por %p73, %p74
      %p76 = scmp.ne.s32.totalorder %s65, %s68
      %p77 = scmp.eq.s32.totalorder %s34, 1
      %p78 = por %p76, %p77
      %p79 = scmp.ne.s32.totalorder %s68, %s69
      %p80 = scmp.eq.s32.totalorder %s34, 0
      %p81 = por %p79, %p80
      %p82 = scmp.ne.s32.totalorder %s68, %s69
      %p83 = scmp.eq.s32.totalorder %s35, 1
      %p84 = por %p82, %p83
      %p86 = scmp.ne.s32.totalorder %s69, %s85
      %p87 = scmp.eq.s32.totalorder %s35, 0
      %p88 = por %p86, %p87
      %s90 = sadd.s32 %s89, 1
      %p93 = scmp.eq.s32.totalorder %s29, 1
      %p94 = scmp.ne.s32.totalorder %s89, %s91
      %p95 = scmp.eq.s32.totalorder %s29, 0
      %p96 = por %p94, %p95
      %p97 = scmp.ne.s32.totalorder %s89, %s91
      %p98 = scmp.eq.s32.totalorder %s34, 1
      %p99 = por %p97, %p98
      %p100 = scmp.ne.s32.totalorder %s91, %s92
      %p101 = scmp.eq.s32.totalorder %s34, 0
      %p102 = por %p100, %p101
      %p103 = scmp.ne.s32.totalorder %s91, %s92
      %p104 = scmp.eq.s32.totalorder %s35, 1
      %p105 = por %p103, %p104
      %p107 = scmp.ne.s32.totalorder %s92, %s106
      %p108 = scmp.eq.s32.totalorder %s35, 0
      %p109 = por %p107, %p108
      %s111 = sadd.s32 %s110, 1
      %p114 = scmp.eq.s32.totalorder %s29, 1
      %p115 = scmp.ne.s32.totalorder %s110, %s112
      %p116 = scmp.eq.s32.totalorder %s29, 0
      %p117 = por %p115, %p116
      %p118 = scmp.ne.s32.totalorder %s110, %s112
      %p119 = scmp.eq.s32.totalorder %s34, 1
      %p120 = por %p118, %p119
      %p121 = scmp.ne.s32.totalorder %s112, %s113
      %p122 = scmp.eq.s32.totalorder %s34, 0
      %p123 = por %p121, %p122
      %p124 = scmp.ne.s32.totalorder %s112, %s113
      %p125 = scmp.eq.s32.totalorder %s35, 1
      %p126 = por %p124, %p125
      %p128 = scmp.ne.s32.totalorder %s113, %s127
      %p129 = scmp.eq.s32.totalorder %s35, 0
      %p130 = por %p128, %p129
      %s132 = sadd.s32 %s131, 1
      %p135 = scmp.eq.s32.totalorder %s29, 1
      %p136 = scmp.ne.s32.totalorder %s131, %s133
      %p137 = scmp.eq.s32.totalorder %s29, 0
      %p138 = por %p136, %p137
      %p139 = scmp.ne.s32.totalorder %s131, %s133
      %p140 = scmp.eq.s32.totalorder %s34, 1
      %p141 = por %p139, %p140
      %p142 = scmp.ne.s32.totalorder %s133, %s134
      %p143 = scmp.eq.s32.totalorder %s34, 0
      %p144 = por %p142, %p143
      %p145 = scmp.ne.s32.totalorder %s133, %s134
      %p146 = scmp.eq.s32.totalorder %s35, 1
      %p147 = por %p145, %p146
      %p149 = scmp.ne.s32.totalorder %s134, %s148
      %p150 = scmp.eq.s32.totalorder %s35, 0
      %p151 = por %p149, %p150
      %s153 = sadd.s32 %s152, 1
      %p156 = scmp.eq.s32.totalorder %s29, 1
      %p157 = scmp.ne.s32.totalorder %s152, %s154
      %p158 = scmp.eq.s32.totalorder %s29, 0
      %p159 = por %p157, %p158
      %p160 = scmp.ne.s32.totalorder %s152, %s154
      %p161 = scmp.eq.s32.totalorder %s34, 1
      %p162 = por %p160, %p161
      %p163 = scmp.ne.s32.totalorder %s154, %s155
      %p164 = scmp.eq.s32.totalorder %s34, 0
      %p165 = por %p163, %p164
      %p166 = scmp.ne.s32.totalorder %s154, %s155
      %p167 = scmp.eq.s32.totalorder %s35, 1
      %p168 = por %p166, %p167
      %p170 = scmp.ne.s32.totalorder %s155, %s169
      %p171 = scmp.eq.s32.totalorder %s35, 0
      %p172 = por %p170, %p171
      %s174 = sadd.s32 %s173, 1
      %p177 = scmp.eq.s32.totalorder %s29, 1
      %p178 = scmp.ne.s32.totalorder %s173, %s175
      %p179 = scmp.eq.s32.totalorder %s29, 0
      %p180 = por %p178, %p179
      %p181 = scmp.ne.s32.totalorder %s173, %s175
      %p182 = scmp.eq.s32.totalorder %s34, 1
      %p183 = por %p181, %p182
      %p184 = scmp.ne.s32.totalorder %s175, %s176
      %p185 = scmp.eq.s32.totalorder %s34, 0
      %p186 = por %p184, %p185
      %p187 = scmp.ne.s32.totalorder %s175, %s176
      %p188 = scmp.eq.s32.totalorder %s35, 1
      %p189 = por %p187, %p188
      %p191 = scmp.ne.s32.totalorder %s176, %s190
      %p192 = scmp.eq.s32.totalorder %s35, 0
      %p193 = por %p191, %p192
      %s195 = sadd.s32 %s194, 1
      %p198 = scmp.eq.s32.totalorder %s29, 1
      %p199 = scmp.ne.s32.totalorder %s194, %s196
      %p200 = scmp.eq.s32.totalorder %s29, 0
      %p201 = por %p199, %p200
      %p202 = scmp.ne.s32.totalorder %s194, %s196
      %p203 = scmp.eq.s32.totalorder %s34, 1
      %p204 = por %p202, %p203
      %p205 = scmp.ne.s32.totalorder %s196, %s197
      %p206 = scmp.eq.s32.totalorder %s34, 0
      %p207 = por %p205, %p206
      %p208 = scmp.ne.s32.totalorder %s196, %s197
      %p209 = scmp.eq.s32.totalorder %s35, 1
      %p210 = por %p208, %p209
      %p212 = scmp.ne.s32.totalorder %s197, %s211
      %p213 = scmp.eq.s32.totalorder %s35, 0
      %p214 = por %p212, %p213
      %s216 = sadd.s32 %s215, 1
      %p219 = scmp.eq.s32.totalorder %s29, 1
      %p220 = scmp.ne.s32.totalorder %s215, %s217
      %p221 = scmp.eq.s32.totalorder %s29, 0
      %p222 = por %p220, %p221
      %p223 = scmp.ne.s32.totalorder %s215, %s217
      %p224 = scmp.eq.s32.totalorder %s34, 1
      %p225 = por %p223, %p224
      %p226 = scmp.ne.s32.totalorder %s217, %s218
      %p227 = scmp.eq.s32.totalorder %s34, 0
      %p228 = por %p226, %p227
      %p229 = scmp.ne.s32.totalorder %s217, %s218
      %p230 = scmp.eq.s32.totalorder %s35, 1
      %p231 = por %p229, %p230
      %p233 = scmp.ne.s32.totalorder %s218, %s232
      %p234 = scmp.eq.s32.totalorder %s35, 0
      %p235 = por %p233, %p234
      %s237 = sadd.s32 %s236, 1
      %p240 = scmp.eq.s32.totalorder %s29, 1
      %p241 = scmp.ne.s32.totalorder %s236, %s238
      %p242 = scmp.eq.s32.totalorder %s29, 0
      %p243 = por %p241, %p242
      %p244 = scmp.ne.s32.totalorder %s236, %s238
      %p245 = scmp.eq.s32.totalorder %s34, 1
      %p246 = por %p244, %p245
      %p247 = scmp.ne.s32.totalorder %s238, %s239
      %p248 = scmp.eq.s32.totalorder %s34, 0
      %p249 = por %p247, %p248
      %p250 = scmp.ne.s32.totalorder %s238, %s239
      %p251 = scmp.eq.s32.totalorder %s35, 1
      %p252 = por %p250, %p251
      %p254 = scmp.ne.s32.totalorder %s239, %s253
      %p255 = scmp.eq.s32.totalorder %s35, 0
      %p256 = por %p254, %p255
      %s258 = sadd.s32 %s257, 1
      %p261 = scmp.eq.s32.totalorder %s29, 1
      %p262 = scmp.ne.s32.totalorder %s257, %s259
      %p263 = scmp.eq.s32.totalorder %s29, 0
      %p264 = por %p262, %p263
      %p265 = scmp.ne.s32.totalorder %s257, %s259
      %p266 = scmp.eq.s32.totalorder %s34, 1
      %p267 = por %p265, %p266
      %p268 = scmp.ne.s32.totalorder %s259, %s260
      %p269 = scmp.eq.s32.totalorder %s34, 0
      %p270 = por %p268, %p269
      %p271 = scmp.ne.s32.totalorder %s259, %s260
      %p272 = scmp.eq.s32.totalorder %s35, 1
      %p273 = por %p271, %p272
      %p275 = scmp.ne.s32.totalorder %s260, %s274
      %p276 = scmp.eq.s32.totalorder %s35, 0
      %p277 = por %p275, %p276
      %s279 = sadd.s32 %s278, 1
      %p282 = scmp.eq.s32.totalorder %s29, 1
      %p283 = scmp.ne.s32.totalorder %s278, %s280
      %p284 = scmp.eq.s32.totalorder %s29, 0
      %p285 = por %p283, %p284
      %p286 = scmp.ne.s32.totalorder %s278, %s280
      %p287 = scmp.eq.s32.totalorder %s34, 1
      %p288 = por %p286, %p287
      %p289 = scmp.ne.s32.totalorder %s280, %s281
      %p290 = scmp.eq.s32.totalorder %s34, 0
      %p291 = por %p289, %p290
      %p292 = scmp.ne.s32.totalorder %s280, %s281
      %p293 = scmp.eq.s32.totalorder %s35, 1
      %p294 = por %p292, %p293
      %p296 = scmp.ne.s32.totalorder %s281, %s295
      %p297 = scmp.eq.s32.totalorder %s35, 0
      %p298 = por %p296, %p297
      %s300 = sadd.s32 %s299, 1
      %p303 = scmp.eq.s32.totalorder %s29, 1
      %p304 = scmp.ne.s32.totalorder %s299, %s301
      %p305 = scmp.eq.s32.totalorder %s29, 0
      %p306 = por %p304, %p305
      %p307 = scmp.ne.s32.totalorder %s299, %s301
      %p308 = scmp.eq.s32.totalorder %s34, 1
      %p309 = por %p307, %p308
      %p310 = scmp.ne.s32.totalorder %s301, %s302
      %p311 = scmp.eq.s32.totalorder %s34, 0
      %p312 = por %p310, %p311
      %p313 = scmp.ne.s32.totalorder %s301, %s302
      %p314 = scmp.eq.s32.totalorder %s35, 1
      %p315 = por %p313, %p314
      %p317 = scmp.ne.s32.totalorder %s302, %s316
      %p318 = scmp.eq.s32.totalorder %s35, 0
      %p319 = por %p317, %p318
      %s321 = sadd.s32 %s320, 1
      %p324 = scmp.eq.s32.totalorder %s29, 1
      %p325 = scmp.ne.s32.totalorder %s320, %s322
      %p326 = scmp.eq.s32.totalorder %s29, 0
      %p327 = por %p325, %p326
      %p328 = scmp.ne.s32.totalorder %s320, %s322
      %p329 = scmp.eq.s32.totalorder %s34, 1
      %p330 = por %p328, %p329
      %p331 = scmp.ne.s32.totalorder %s322, %s323
      %p332 = scmp.eq.s32.totalorder %s34, 0
      %p333 = por %p331, %p332
      %p334 = scmp.ne.s32.totalorder %s322, %s323
      %p335 = scmp.eq.s32.totalorder %s35, 1
      %p336 = por %p334, %p335
      %p338 = scmp.ne.s32.totalorder %s323, %s337
      %p339 = scmp.eq.s32.totalorder %s35, 0
      %p340 = por %p338, %p339
      %s342 = sadd.s32 %s341, 1
      %p345 = scmp.eq.s32.totalorder %s29, 1
      %p346 = scmp.ne.s32.totalorder %s341, %s343
      %p347 = scmp.eq.s32.totalorder %s29, 0
      %p348 = por %p346, %p347
      %p349 = scmp.ne.s32.totalorder %s341, %s343
      %p350 = scmp.eq.s32.totalorder %s34, 1
      %p351 = por %p349, %p350
      %p352 = scmp.ne.s32.totalorder %s343, %s344
      %p353 = scmp.eq.s32.totalorder %s34, 0
      %p354 = por %p352, %p353
      %p355 = scmp.ne.s32.totalorder %s343, %s344
      %p356 = scmp.eq.s32.totalorder %s35, 1
      %p357 = por %p355, %p356
      %p359 = scmp.ne.s32.totalorder %s344, %s358
      %p360 = scmp.eq.s32.totalorder %s35, 0
      %p361 = por %p359, %p360
      %s363 = sadd.s32 %s362, 1
      %p366 = scmp.eq.s32.totalorder %s29, 1
      %p367 = scmp.ne.s32.totalorder %s362, %s364
      %p368 = scmp.eq.s32.totalorder %s29, 0
      %p369 = por %p367, %p368
      %p370 = scmp.ne.s32.totalorder %s362, %s364
      %p371 = scmp.eq.s32.totalorder %s34, 1
      %p372 = por %p370, %p371
      %p373 = scmp.ne.s32.totalorder %s364, %s365
      %p374 = scmp.eq.s32.totalorder %s34, 0
      %p375 = por %p373, %p374
      %p376 = scmp.ne.s32.totalorder %s364, %s365
      %p377 = scmp.eq.s32.totalorder %s35, 1
      %p378 = por %p376, %p377
      %p380 = scmp.ne.s32.totalorder %s365, %s379
      %p381 = scmp.eq.s32.totalorder %s35, 0
      %p382 = por %p380, %p381
      %s384 = sadd.s32 %s383, 1
      %p387 = scmp.eq.s32.totalorder %s29, 1
      %p388 = scmp.ne.s32.totalorder %s383, %s385
      %p389 = scmp.eq.s32.totalorder %s29, 0
      %p390 = por %p388, %p389
      %p391 = scmp.ne.s32.totalorder %s383, %s385
      %p392 = scmp.eq.s32.totalorder %s34, 1
      %p393 = por %p391, %p392
      %p394 = scmp.ne.s32.totalorder %s385, %s386
      %p395 = scmp.eq.s32.totalorder %s34, 0
      %p396 = por %p394, %p395
      %p397 = scmp.ne.s32.totalorder %s385, %s386
      %p398 = scmp.eq.s32.totalorder %s35, 1
      %p399 = por %p397, %p398
      %p401 = scmp.ne.s32.totalorder %s386, %s400
      %p402 = scmp.eq.s32.totalorder %s35, 0
      %p403 = por %p401, %p402
      %s405 = sadd.s32 %s404, 1
      %p408 = scmp.eq.s32.totalorder %s29, 1
      %p409 = scmp.ne.s32.totalorder %s404, %s406
      %p410 = scmp.eq.s32.totalorder %s29, 0
      %p411 = por %p409, %p410
      %p412 = scmp.ne.s32.totalorder %s404, %s406
      %p413 = scmp.eq.s32.totalorder %s34, 1
      %p414 = por %p412, %p413
      %p415 = scmp.ne.s32.totalorder %s406, %s407
      %p416 = scmp.eq.s32.totalorder %s34, 0
      %p417 = por %p415, %p416
      %p418 = scmp.ne.s32.totalorder %s406, %s407
      %p419 = scmp.eq.s32.totalorder %s35, 1
      %p420 = por %p418, %p419
      %p422 = scmp.ne.s32.totalorder %s407, %s421
      %p423 = scmp.eq.s32.totalorder %s35, 0
      %p424 = por %p422, %p423
      %s425 = ssub.s32 %s29, %s36
      %p426 = scmp.eq.s32.totalorder %s425, 0
      %s428 = sadd.s32 %s427, 1
      %s429 = scalar_select %p426, %s427, %s428
      %p432 = pneg %p426
      %p433 = scmp.eq.s32.totalorder %s29, 1
      %p434 = por %p432, %p433
      %p435 = scmp.ne.s32.totalorder %s427, %s430
      %p436 = scmp.eq.s32.totalorder %s29, 0
      %p437 = por %p435, %p436
      %p438 = scmp.ne.s32.totalorder %s427, %s430
      %p439 = scmp.eq.s32.totalorder %s34, 1
      %p440 = por %p438, %p439
      %p441 = scmp.ne.s32.totalorder %s430, %s431
      %p442 = scmp.eq.s32.totalorder %s34, 0
      %p443 = por %p441, %p442
      %p444 = scmp.ne.s32.totalorder %s430, %s431
      %p445 = scmp.eq.s32.totalorder %s35, 1
      %p446 = por %p444, %p445
      %p448 = scmp.ne.s32.totalorder %s431, %s447
      %p449 = scmp.eq.s32.totalorder %s35, 0
      %p450 = por %p448, %p449
      %p451 = scmp.le.s32.totalorder 1, %s29
      %p452 = scmp.lt.s32.totalorder %s29, 3
      %p453 = pnand %p451, %p452
      %p454 = pneg %p453
      // Predicated region
      $region9: #{tpu_custom_call.1} parent=5 // pred_check
        _
      $region10: #{tpu_custom_call.1} parent=5 // pred_check_branch
        %456 = sbr.rel (%p453) target = $region12
      $region11: #{tpu_custom_call.1} parent=5 // pred_region
        %s457 = ssub.s32 %s29, 1
        // Predicated region
        $region13: #{tpu_custom_call.1} parent=11 // pred_check
          %p458 = pneg %p102
        $region14: #{tpu_custom_call.1} parent=11 // pred_check_branch
          %460 = sbr.rel (%p458) target = $region16
        $region15: #{tpu_custom_call.1} parent=11 // pred_region
          _
        $region16: #{tpu_custom_call.1} parent=11 // pred_fallthru
          _
        // Predicated region
        $region17: #{tpu_custom_call.1} parent=11 // pred_check
          %p461 = pneg %p123
        $region18: #{tpu_custom_call.1} parent=11 // pred_check_branch
          %463 = sbr.rel (%p461) target = $region20
        $region19: #{tpu_custom_call.1} parent=11 // pred_region
          _
        $region20: #{tpu_custom_call.1} parent=11 // pred_fallthru
          _
        // Predicated region
        $region21: #{tpu_custom_call.1} parent=11 // pred_check
          %p464 = pneg %p144
        $region22: #{tpu_custom_call.1} parent=11 // pred_check_branch
          %466 = sbr.rel (%p464) target = $region24
        $region23: #{tpu_custom_call.1} parent=11 // pred_region
          _
        $region24: #{tpu_custom_call.1} parent=11 // pred_fallthru
          _
        // Predicated region
        $region25: #{tpu_custom_call.1} parent=11 // pred_check
          %p467 = pneg %p165
        $region26: #{tpu_custom_call.1} parent=11 // pred_check_branch
          %469 = sbr.rel (%p467) target = $region28
        $region27: #{tpu_custom_call.1} parent=11 // pred_region
          _
        $region28: #{tpu_custom_call.1} parent=11 // pred_fallthru
          _
        // Predicated region
        $region29: #{tpu_custom_call.1} parent=11 // pred_check
          %p470 = pneg %p186
        $region30: #{tpu_custom_call.1} parent=11 // pred_check_branch
          %472 = sbr.rel (%p470) target = $region32
        $region31: #{tpu_custom_call.1} parent=11 // pred_region
          _
        $region32: #{tpu_custom_call.1} parent=11 // pred_fallthru
          _
        // Predicated region
        $region33: #{tpu_custom_call.1} parent=11 // pred_check
          %p473 = pneg %p207
        $region34: #{tpu_custom_call.1} parent=11 // pred_check_branch
          %475 = sbr.rel (%p473) target = $region36
        $region35: #{tpu_custom_call.1} parent=11 // pred_region
          _
        $region36: #{tpu_custom_call.1} parent=11 // pred_fallthru
          _
        // Predicated region
        $region37: #{tpu_custom_call.1} parent=11 // pred_check
          %p476 = pneg %p228
        $region38: #{tpu_custom_call.1} parent=11 // pred_check_branch
          %478 = sbr.rel (%p476) target = $region40
        $region39: #{tpu_custom_call.1} parent=11 // pred_region
          _
        $region40: #{tpu_custom_call.1} parent=11 // pred_fallthru
          _
        // Predicated region
        $region41: #{tpu_custom_call.1} parent=11 // pred_check
          %p479 = pneg %p249
        $region42: #{tpu_custom_call.1} parent=11 // pred_check_branch
          %481 = sbr.rel (%p479) target = $region44
        $region43: #{tpu_custom_call.1} parent=11 // pred_region
          _
        $region44: #{tpu_custom_call.1} parent=11 // pred_fallthru
          _
        // Predicated region
        $region45: #{tpu_custom_call.1} parent=11 // pred_check
          %p482 = pneg %p270
        $region46: #{tpu_custom_call.1} parent=11 // pred_check_branch
          %484 = sbr.rel (%p482) target = $region48
        $region47: #{tpu_custom_call.1} parent=11 // pred_region
          _
        $region48: #{tpu_custom_call.1} parent=11 // pred_fallthru
          _
        // Predicated region
        $region49: #{tpu_custom_call.1} parent=11 // pred_check
          %p485 = pneg %p291
        $region50: #{tpu_custom_call.1} parent=11 // pred_check_branch
          %487 = sbr.rel (%p485) target = $region52
        $region51: #{tpu_custom_call.1} parent=11 // pred_region
          _
        $region52: #{tpu_custom_call.1} parent=11 // pred_fallthru
          _
        // Predicated region
        $region53: #{tpu_custom_call.1} parent=11 // pred_check
          %p488 = pneg %p312
        $region54: #{tpu_custom_call.1} parent=11 // pred_check_branch
          %490 = sbr.rel (%p488) target = $region56
        $region55: #{tpu_custom_call.1} parent=11 // pred_region
          _
        $region56: #{tpu_custom_call.1} parent=11 // pred_fallthru
          _
        // Predicated region
        $region57: #{tpu_custom_call.1} parent=11 // pred_check
          %p491 = pneg %p333
        $region58: #{tpu_custom_call.1} parent=11 // pred_check_branch
          %493 = sbr.rel (%p491) target = $region60
        $region59: #{tpu_custom_call.1} parent=11 // pred_region
          _
        $region60: #{tpu_custom_call.1} parent=11 // pred_fallthru
          _
        // Predicated region
        $region61: #{tpu_custom_call.1} parent=11 // pred_check
          %p494 = pneg %p354
        $region62: #{tpu_custom_call.1} parent=11 // pred_check_branch
          %496 = sbr.rel (%p494) target = $region64
        $region63: #{tpu_custom_call.1} parent=11 // pred_region
          _
        $region64: #{tpu_custom_call.1} parent=11 // pred_fallthru
          _
        // Predicated region
        $region65: #{tpu_custom_call.1} parent=11 // pred_check
          %p497 = pneg %p375
        $region66: #{tpu_custom_call.1} parent=11 // pred_check_branch
          %499 = sbr.rel (%p497) target = $region68
        $region67: #{tpu_custom_call.1} parent=11 // pred_region
          _
        $region68: #{tpu_custom_call.1} parent=11 // pred_fallthru
          _
        // Predicated region
        $region69: #{tpu_custom_call.1} parent=11 // pred_check
          %p500 = pneg %p396
        $region70: #{tpu_custom_call.1} parent=11 // pred_check_branch
          %502 = sbr.rel (%p500) target = $region72
        $region71: #{tpu_custom_call.1} parent=11 // pred_region
          _
        $region72: #{tpu_custom_call.1} parent=11 // pred_fallthru
          _
        // Predicated region
        $region73: #{tpu_custom_call.1} parent=11 // pred_check
          %p503 = pneg %p417
        $region74: #{tpu_custom_call.1} parent=11 // pred_check_branch
          %505 = sbr.rel (%p503) target = $region76
        $region75: #{tpu_custom_call.1} parent=11 // pred_region
          _
        $region76: #{tpu_custom_call.1} parent=11 // pred_fallthru
          _
      $region12: #{tpu_custom_call.1} parent=5 // pred_fallthru
        _
      %p506 = scmp.lt.s32.totalorder %s29, 2
      // Predicated region
      $region77: #{tpu_custom_call.1} parent=5 // pred_check
        %p507 = pneg %p506
      $region78: #{tpu_custom_call.1} parent=5 // pred_check_branch
        %509 = sbr.rel (%p507) target = $region80
      $region79: #{tpu_custom_call.1} parent=5 // pred_region
        // Predicated region
        $region81: #{tpu_custom_call.1} parent=79 // pred_check
          %p510 = pneg %p49
        $region82: #{tpu_custom_call.1} parent=79 // pred_check_branch
          %512 = sbr.rel (%p510) target = $region84
        $region83: #{tpu_custom_call.1} parent=79 // pred_region
          %p513 = scmp.lt.s32.totalorder %s29, 1
          %s514 = scalar_select %p513, %s29, 1
          %s515 = smul.addr %s514, 8
          %s516 = scalar_lea.vmem %s0, %s515
        $region84: #{tpu_custom_call.1} parent=79 // pred_fallthru
          _
        // Predicated region
        $region85: #{tpu_custom_call.1} parent=79 // pred_check
          %p517 = pneg %p75
        $region86: #{tpu_custom_call.1} parent=79 // pred_check_branch
          %519 = sbr.rel (%p517) target = $region88
        $region87: #{tpu_custom_call.1} parent=79 // pred_region
          %p520 = scmp.lt.s32.totalorder %s29, 1
          %s521 = scalar_select %p520, %s29, 1
          %s522 = scalar_lea.vmem %s1, %s521
        $region88: #{tpu_custom_call.1} parent=79 // pred_fallthru
          _
      $region80: #{tpu_custom_call.1} parent=5 // pred_fallthru
        _
      %p523 = scmp.le.s32.totalorder 1, %s29
      %p524 = scmp.lt.s32.totalorder %s29, 3
      %p525 = pnand %p523, %p524
      %p526 = pneg %p525
      // Predicated region
      $region89: #{tpu_custom_call.1} parent=5 // pred_check
        _
      $region90: #{tpu_custom_call.1} parent=5 // pred_check_branch
        %528 = sbr.rel (%p525) target = $region92
      $region91: #{tpu_custom_call.1} parent=5 // pred_region
        %s529 = ssub.s32 %s29, 1
        %p530 = scmp.lt.s32.totalorder %s34, 1
        %s531 = scalar_select %p530, %s34, 1
        %s532 = smul.addr %s531, 8
        %s533 = scalar_lea.vmem %s0, %s532
        %p534 = pneg %p55
        %p535 = pneg %p52
        %p536 = scmp.lt.s32.totalorder %s34, 1
        %s537 = scalar_select %p536, %s34, 1
        %s538 = scalar_lea.vmem %s1, %s537
        %p539 = pneg %p81
        %p540 = pneg %p78
        %p541 = pneg %p102
        %p542 = pneg %p99
        %p543 = pneg %p123
        %p544 = pneg %p120
        %p545 = pneg %p144
        %p546 = pneg %p141
        %p547 = pneg %p165
        %p548 = pneg %p162
        %p549 = pneg %p186
        %p550 = pneg %p183
        %p551 = pneg %p207
        %p552 = pneg %p204
        %p553 = pneg %p228
        %p554 = pneg %p225
        %p555 = pneg %p249
        %p556 = pneg %p246
        %p557 = pneg %p270
        %p558 = pneg %p267
        %p559 = pneg %p291
        %p560 = pneg %p288
        %p561 = pneg %p312
        %p562 = pneg %p309
        %p563 = pneg %p333
        %p564 = pneg %p330
        %p565 = pneg %p354
        %p566 = pneg %p351
        %p567 = pneg %p375
        %p568 = pneg %p372
        %p569 = pneg %p396
        %p570 = pneg %p393
        %p571 = pneg %p417
        %p572 = pneg %p414
        %p573 = pneg %p443
        %p574 = pneg %p440
        %s575 = sand.u32 %s430, 1
        %s576 = scalar_lea.sflag [#allocation4], %s575
        %s577 = sand.u32 %s430, 1
        %s578 = scalar_lea.vmem [#allocation3], %s577
        %p579 = scmp.lt.s32.totalorder %s34, 1
        %s580 = scalar_select %p579, %s34, 1
        %s581 = smul.addr %s580, 8
        %s582 = scalar_lea.vmem %s0, %s581
        %p583 = scmp.lt.s32.totalorder %s34, 1
        %s584 = scalar_select %p583, %s34, 1
        %s585 = scalar_lea.vmem %s1, %s584
        %v587 = vld [vmem:[%s582] sm:$0xff]
        %v588 = vld [vmem:[%s585] sm:$0x1]
        %v590 = vlaneseq
        %v591 = vshrl.u32 %v590, 7
        %v592 = vsub.s32 0, %v591
        %v593 = vrot.slane %v588, %v592
        %v595 = vadd.f32 %v587, %v593
        %v596 = vld [vmem:[%s2] sm:$0xff]
        %v597 = vld [vmem:[%s2 + $0x8] sm:$0xff]
        %v598 = vld [vmem:[%s2 + $0x10] sm:$0xff]
        %v599 = vld [vmem:[%s2 + $0x18] sm:$0xff]
        %v600 = vld [vmem:[%s3] sm:$0xff]
        %v601 = vld [vmem:[%s3 + $0x8] sm:$0xff]
        %v602 = vld [vmem:[%s3 + $0x10] sm:$0xff]
        %v603 = vld [vmem:[%s3 + $0x18] sm:$0xff]
        %v604 = vld [vmem:[%s8] sm:$0x3f]
        %v605 = vpack.c.bf16 %v595, %v595
        %v606 = vld [vmem:[%s4] sm:$0xf]
        %v607 = vld [vmem:[%s4 + $0x4] sm:$0xf]
        %v608 = vld [vmem:[%s4 + $0x8] sm:$0xf]
        %v609 = vld [vmem:[%s4 + $0xc] sm:$0xf]
        %v614 = vunpack.c.l.b16 %v606
        %v615 = vunpack.c.l.b16 %v607
        %v616 = vunpack.c.l.b16 %v608
        %v617 = vunpack.c.l.b16 %v609
        %v618 = vpack.c.b16 %v615, %v614
        %v619 = vpack.c.b16 %v617, %v616
        %vm622 = vcmask 261120
        %v624 = vsel %vm622, %v605, 0
        %626 = vmatprep.subr.bf16.mxu0 0
        %627 = vmatpush1.bf16.msra.mxu0 %v618
        %628 = vmatprep.subr.bf16.mxu0 0
        %629 = vmatpush1.bf16.msra.mxu0 %v619
        %630 = vmatprep.subr.bf16.mxu0 0
        %631 = vmatpush1.bf16.msra.mxu0 0
        %632 = vmatprep.subr.bf16.mxu0 0
        %633 = vmatpush1.bf16.msra.mxu0 0
        %634 = vmatprep.subr.bf16.mxu0 0
        %635 = vmatpush1.bf16.msra.mxu0 0
        %636 = vmatprep.subr.bf16.mxu0 0
        %637 = vmatpush1.bf16.msra.mxu0 0
        %638 = vmatprep.subr.bf16.mxu0 0
        %639 = vmatpush1.bf16.msra.mxu0 0
        %640 = vmatprep.subr.bf16.mxu0 0
        %641 = vmatpush1.bf16.msra.mxu0 0
        %642 = vmatprep.subr.bf16.mxu0 0
        %643 = vmatpush1.bf16.msra.mxu0 0
        %644 = vmatprep.subr.bf16.mxu0 0
        %645 = vmatpush1.bf16.msra.mxu0 0
        %646 = vmatprep.subr.bf16.mxu0 0
        %647 = vmatpush1.bf16.msra.mxu0 0
        %648 = vmatprep.subr.bf16.mxu0 0
        %649 = vmatpush1.bf16.msra.mxu0 0
        %650 = vmatprep.subr.bf16.mxu0 0
        %651 = vmatpush1.bf16.msra.mxu0 0
        %652 = vmatprep.subr.bf16.mxu0 0
        %653 = vmatpush1.bf16.msra.mxu0 0
        %654 = vmatprep.subr.bf16.mxu0 0
        %655 = vmatpush1.bf16.msra.mxu0 0
        %656 = vmatprep.subr.bf16.mxu0 0
        %657 = vmatpush1.bf16.msra.mxu0 0
        %658 = vmatprep.mubr.bf16.mxu0 0
        %659 = vmatmul.mubr.bf16.gmra.mrb[0].mxu0 %v624
        %v660 = vpop.f32.mrb[0].mxu0
        %v661 = vadd.f32 0.0, %v660
        %v662 = vpop.f32.mrb[0].mxu0
        %v663 = vpop.f32.mrb[0].mxu0
        %v664 = vpop.f32.mrb[0].mxu0
        %665 = vdwg.mxu0
        %v666 = vmul.f32 %v661, 0.17677669
        %671 = vrot.lane.b32.xlu0 %v596, 32
        %v672 = vpop.permute.xlu0 %671
        %673 = vrot.lane.b32.xlu0 %v597, 32
        %v674 = vpop.permute.xlu0 %673
        %675 = vrot.lane.b32.xlu0 %v598, 32
        %v676 = vpop.permute.xlu0 %675
        %677 = vrot.lane.b32.xlu0 %v599, 32
        %v678 = vpop.permute.xlu0 %677
        %v683 = vmul.f32 %v661, %v672
        %v684 = vmul.f32 %v661, %v674
        %v685 = vmul.f32 %v661, %v676
        %v686 = vmul.f32 %v661, %v678
        %687 = vrot.lane.b32.xlu0 %v596, 64
        %v688 = vpop.permute.xlu0 %687
        %689 = vrot.lane.b32.xlu0 %v597, 64
        %v690 = vpop.permute.xlu0 %689
        %691 = vrot.lane.b32.xlu0 %v598, 64
        %v692 = vpop.permute.xlu0 %691
        %693 = vrot.lane.b32.xlu0 %v599, 64
        %v694 = vpop.permute.xlu0 %693
        %v699 = vmul.f32 %v661, %v688
        %v700 = vmul.f32 %v661, %v690
        %v701 = vmul.f32 %v661, %v692
        %v702 = vmul.f32 %v661, %v694
        %v703 = vpack.c.bf16 %v666, %v666
        %v704 = vpack.c.bf16 %v684, %v683
        %v705 = vpack.c.bf16 %v686, %v685
        %708 = vrot.lane.b32.xlu0 %v704, 96
        %v709 = vpop.permute.xlu0 %708
        %710 = vrot.lane.b32.xlu0 %v705, 96
        %v711 = vpop.permute.xlu0 %710
        %v713 = vsel %vm622, %v703, 0
        %v716 = vsel %vm622, %v709, 0
        %v719 = vsel %vm622, %v711, 0
        %721 = vmatprep.subr.bf16.mxu0 0
        %722 = vmatpush1.bf16.xpose.msra.mxu0 %v716
        %723 = vmatprep.subr.bf16.mxu0 0
        %724 = vmatpush1.bf16.xpose.msra.mxu0 %v719
        %725 = vmatprep.subr.bf16.mxu0 0
        %726 = vmatpush1.bf16.xpose.msra.mxu0 0
        %727 = vmatprep.subr.bf16.mxu0 0
        %728 = vmatpush1.bf16.xpose.msra.mxu0 0
        %729 = vmatprep.subr.bf16.mxu0 0
        %730 = vmatpush1.bf16.xpose.msra.mxu0 0
        %731 = vmatprep.subr.bf16.mxu0 0
        %732 = vmatpush1.bf16.xpose.msra.mxu0 0
        %733 = vmatprep.subr.bf16.mxu0 0
        %734 = vmatpush1.bf16.xpose.msra.mxu0 0
        %735 = vmatprep.subr.bf16.mxu0 0
        %736 = vmatpush1.bf16.xpose.msra.mxu0 0
        %737 = vmatprep.subr.bf16.mxu0 0
        %738 = vmatpush1.bf16.xpose.msra.mxu0 0
        %739 = vmatprep.subr.bf16.mxu0 0
        %740 = vmatpush1.bf16.xpose.msra.mxu0 0
        %741 = vmatprep.subr.bf16.mxu0 0
        %742 = vmatpush1.bf16.xpose.msra.mxu0 0
        %743 = vmatprep.subr.bf16.mxu0 0
        %744 = vmatpush1.bf16.xpose.msra.mxu0 0
        %745 = vmatprep.subr.bf16.mxu0 0
        %746 = vmatpush1.bf16.xpose.msra.mxu0 0
        %747 = vmatprep.subr.bf16.mxu0 0
        %748 = vmatpush1.bf16.xpose.msra.mxu0 0
        %749 = vmatprep.subr.bf16.mxu0 0
        %750 = vmatpush1.bf16.xpose.msra.mxu0 0
        %751 = vmatprep.subr.bf16.mxu0 0
        %752 = vmatpush1.bf16.xpose.msra.mxu0 0
        %753 = vmatprep.mubr.bf16.mxu0 0
        %754 = vmatmul.mubr.bf16.gmra.mrb[0].mxu0 %v713
        %v755 = vpop.f32.mrb[0].mxu0
        %v756 = vadd.f32 0.0, %v755
        %v757 = vpop.f32.mrb[0].mxu0
        %v758 = vpop.f32.mrb[0].mxu0
        %v759 = vpop.f32.mrb[0].mxu0
        %760 = vdwg.mxu0
        %v761 = vsel %vm622, %v756, -inf
        %762 = vmax.xlane.f32.xlu0 %v761
        %v763 = vpop.xlane.xlu0 %762
        %v764 = vsub.f32 %v756, %v763
        %v765 = vmul.f32 %v764, 1.442695
        %v766 = vpow.pop %v765
        %v768 = vsel %vm622, %v766, 0
        %770 = vmatprep.subr.mxu0 0.0
        %771 = vmatpush1.msra.mxu0 %v600
        %772 = vmatprep.subr.mxu0 0.0
        %773 = vmatpush1.msra.mxu0 %v601
        %774 = vmatprep.subr.mxu0 0.0
        %775 = vmatpush1.msra.mxu0 %v602
        %776 = vmatprep.subr.mxu0 0.0
        %777 = vmatpush1.msra.mxu0 %v603
        %778 = vmatprep.subr.mxu0 0.0
        %779 = vmatpush1.msra.mxu0 0.0
        %780 = vmatprep.subr.mxu0 0.0
        %781 = vmatpush1.msra.mxu0 0.0
        %782 = vmatprep.subr.mxu0 0.0
        %783 = vmatpush1.msra.mxu0 0.0
        %784 = vmatprep.subr.mxu0 0.0
        %785 = vmatpush1.msra.mxu0 0.0
        %786 = vmatprep.subr.mxu0 0.0
        %787 = vmatpush1.msra.mxu0 0.0
        %788 = vmatprep.subr.mxu0 0.0
        %789 = vmatpush1.msra.mxu0 0.0
        %790 = vmatprep.subr.mxu0 0.0
        %791 = vmatpush1.msra.mxu0 0.0
        %792 = vmatprep.subr.mxu0 0.0
        %793 = vmatpush1.msra.mxu0 0.0
        %794 = vmatprep.subr.mxu0 0.0
        %795 = vmatpush1.msra.mxu0 0.0
        %796 = vmatprep.subr.mxu0 0.0
        %797 = vmatpush1.msra.mxu0 0.0
        %798 = vmatprep.subr.mxu0 0.0
        %799 = vmatpush1.msra.mxu0 0.0
        %800 = vmatprep.subr.mxu0 0.0
        %801 = vmatpush1.msra.mxu0 0.0
        %802 = vmatprep.subr.mxu0 0.0
        %803 = vmatpush1.msra.mxu0 0.0
        %804 = vmatprep.subr.mxu0 0.0
        %805 = vmatpush1.msra.mxu0 0.0
        %806 = vmatprep.subr.mxu0 0.0
        %807 = vmatpush1.msra.mxu0 0.0
        %808 = vmatprep.subr.mxu0 0.0
        %809 = vmatpush1.msra.mxu0 0.0
        %810 = vmatprep.subr.mxu0 0.0
        %811 = vmatpush1.msra.mxu0 0.0
        %812 = vmatprep.subr.mxu0 0.0
        %813 = vmatpush1.msra.mxu0 0.0
        %814 = vmatprep.subr.mxu0 0.0
        %815 = vmatpush1.msra.mxu0 0.0
        %816 = vmatprep.subr.mxu0 0.0
        %817 = vmatpush1.msra.mxu0 0.0
        %818 = vmatprep.subr.mxu0 0.0
        %819 = vmatpush1.msra.mxu0 0.0
        %820 = vmatprep.subr.mxu0 0.0
        %821 = vmatpush1.msra.mxu0 0.0
        %822 = vmatprep.subr.mxu0 0.0
        %823 = vmatpush1.msra.mxu0 0.0
        %824 = vmatprep.subr.mxu0 0.0
        %825 = vmatpush1.msra.mxu0 0.0
        %826 = vmatprep.subr.mxu0 0.0
        %827 = vmatpush1.msra.mxu0 0.0
        %828 = vmatprep.subr.mxu0 0.0
        %829 = vmatpush1.msra.mxu0 0.0
        %830 = vmatprep.subr.mxu0 0.0
        %831 = vmatpush1.msra.mxu0 0.0
        %832 = vmatprep.subr.mxu0 0.0
        %833 = vmatpush1.msra.mxu0 0.0
        %834 = vmatprep.mubr.f32.mxu0 0.0
        %835 = vmatmul.mubr.f32.gmra.mrb[0].mxu0 %v768
        %v836 = vpop.f32.mrb[0].mxu0
        %v837 = vadd.f32 0.0, %v836
        %v838 = vpop.f32.mrb[0].mxu0
        %839 = vdwg.mxu0
        %v840 = vrcp.pop %v837
        %v841 = vmul.f32 %v766, %v840
        %v842 = vpack.c.bf16 %v841, %v841
        %v843 = vpack.c.bf16 %v700, %v699
        %v844 = vpack.c.bf16 %v702, %v701
        %847 = vrot.lane.b32.xlu0 %v843, 64
        %v848 = vpop.permute.xlu0 %847
        %849 = vrot.lane.b32.xlu0 %v844, 64
        %v850 = vpop.permute.xlu0 %849
        %v854 = vsel %vm622, %v842, 0
        %856 = vmatprep.subr.bf16.mxu0 0
        %857 = vmatpush1.bf16.msra.mxu0 %v848
        %858 = vmatprep.subr.bf16.mxu0 0
        %859 = vmatpush1.bf16.msra.mxu0 %v850
        %860 = vmatprep.subr.bf16.mxu0 0
        %861 = vmatpush1.bf16.msra.mxu0 0
        %862 = vmatprep.subr.bf16.mxu0 0
        %863 = vmatpush1.bf16.msra.mxu0 0
        %864 = vmatprep.subr.bf16.mxu0 0
        %865 = vmatpush1.bf16.msra.mxu0 0
        %866 = vmatprep.subr.bf16.mxu0 0
        %867 = vmatpush1.bf16.msra.mxu0 0
        %868 = vmatprep.subr.bf16.mxu0 0
        %869 = vmatpush1.bf16.msra.mxu0 0
        %870 = vmatprep.subr.bf16.mxu0 0
        %871 = vmatpush1.bf16.msra.mxu0 0
        %872 = vmatprep.subr.bf16.mxu0 0
        %873 = vmatpush1.bf16.msra.mxu0 0
        %874 = vmatprep.subr.bf16.mxu0 0
        %875 = vmatpush1.bf16.msra.mxu0 0
        %876 = vmatprep.subr.bf16.mxu0 0
        %877 = vmatpush1.bf16.msra.mxu0 0
        %878 = vmatprep.subr.bf16.mxu0 0
        %879 = vmatpush1.bf16.msra.mxu0 0
        %880 = vmatprep.subr.bf16.mxu0 0
        %881 = vmatpush1.bf16.msra.mxu0 0
        %882 = vmatprep.subr.bf16.mxu0 0
        %883 = vmatpush1.bf16.msra.mxu0 0
        %884 = vmatprep.subr.bf16.mxu0 0
        %885 = vmatpush1.bf16.msra.mxu0 0
        %886 = vmatprep.subr.bf16.mxu0 0
        %887 = vmatpush1.bf16.msra.mxu0 0
        %888 = vmatprep.mubr.bf16.mxu0 0
        %889 = vmatmul.mubr.bf16.gmra.mrb[0].mxu0 %v854
        %v890 = vpop.f32.mrb[0].mxu0
        %v891 = vadd.f32 0.0, %v890
        %v892 = vpop.f32.mrb[0].mxu0
        %v893 = vpop.f32.mrb[0].mxu0
        %v894 = vpop.f32.mrb[0].mxu0
        %895 = vdwg.mxu0
        %v896 = vpack.c.bf16 %v891, %v891
        %v897 = vld [vmem:[%s5] sm:$0xf]
        %v898 = vld [vmem:[%s5 + $0x4] sm:$0xf]
        %v899 = vld [vmem:[%s5 + $0x8] sm:$0xf]
        %v900 = vld [vmem:[%s5 + $0xc] sm:$0xf]
        %v901 = vlaneseq
        %v902 = vshrl.u32 %v901, 7
        %v903 = vsub.s32 0, %v902
        %v904 = vrot.slane %v604, %v903
        %v909 = vunpack.c.l.b16 %v897
        %v910 = vunpack.c.l.b16 %v898
        %v911 = vunpack.c.l.b16 %v899
        %v912 = vunpack.c.l.b16 %v900
        %v913 = vpack.c.b16 %v910, %v909
        %v914 = vpack.c.b16 %v912, %v911
        %v918 = vsel %vm622, %v896, 0
        %920 = vmatprep.subr.bf16.mxu0 0
        %921 = vmatpush1.bf16.msra.mxu0 %v913
        %922 = vmatprep.subr.bf16.mxu0 0
        %923 = vmatpush1.bf16.msra.mxu0 %v914
        %924 = vmatprep.subr.bf16.mxu0 0
        %925 = vmatpush1.bf16.msra.mxu0 0
        %926 = vmatprep.subr.bf16.mxu0 0
        %927 = vmatpush1.bf16.msra.mxu0 0
        %928 = vmatprep.subr.bf16.mxu0 0
        %929 = vmatpush1.bf16.msra.mxu0 0
        %930 = vmatprep.subr.bf16.mxu0 0
        %931 = vmatpush1.bf16.msra.mxu0 0
        %932 = vmatprep.subr.bf16.mxu0 0
        %933 = vmatpush1.bf16.msra.mxu0 0
        %934 = vmatprep.subr.bf16.mxu0 0
        %935 = vmatpush1.bf16.msra.mxu0 0
        %936 = vmatprep.subr.bf16.mxu0 0
        %937 = vmatpush1.bf16.msra.mxu0 0
        %938 = vmatprep.subr.bf16.mxu0 0
        %939 = vmatpush1.bf16.msra.mxu0 0
        %940 = vmatprep.subr.bf16.mxu0 0
        %941 = vmatpush1.bf16.msra.mxu0 0
        %942 = vmatprep.subr.bf16.mxu0 0
        %943 = vmatpush1.bf16.msra.mxu0 0
        %944 = vmatprep.subr.bf16.mxu0 0
        %945 = vmatpush1.bf16.msra.mxu0 0
        %946 = vmatprep.subr.bf16.mxu0 0
        %947 = vmatpush1.bf16.msra.mxu0 0
        %948 = vmatprep.subr.bf16.mxu0 0
        %949 = vmatpush1.bf16.msra.mxu0 0
        %950 = vmatprep.subr.bf16.mxu0 0
        %951 = vmatpush1.bf16.msra.mxu0 0
        %952 = vmatprep.mubr.bf16.mxu0 0
        %953 = vmatmul.mubr.bf16.gmra.mrb[0].mxu0 %v918
        %v954 = vpop.f32.mrb[0].mxu0
        %v955 = vadd.f32 %v904, %v954
        %v956 = vpop.f32.mrb[0].mxu0
        %v957 = vpop.f32.mrb[0].mxu0
        %v958 = vpop.f32.mrb[0].mxu0
        %959 = vdwg.mxu0
        %v960 = vmul.f32 %v955, %v595
        %v961 = vsel %vm622, %v960, 0.0
        %962 = vadd.xlane.f32.xlu0 %v961
        %v963 = vpop.xlane.xlu0 %962
        %v964 = vrcp.pop 32.0
        %v965 = vmul.f32 %v963, %v964
        %v966 = vsub.f32 %v960, %v965
        %v967 = vmul.f32 %v966, %v966
        %v968 = vsel %vm622, %v967, 0.0
        %969 = vadd.xlane.f32.xlu0 %v968
        %v970 = vpop.xlane.xlu0 %969
        %v971 = vmul.f32 %v970, %v964
        %v972 = vadd.f32 %v971, 1e-05
        %v973 = vrsqrt.pop %v972
        %v974 = vmul.f32 %v966, %v973
        %v975 = vlaneseq
        %v976 = vshrl.u32 %v975, 7
        %v977 = vsub.s32 1, %v976
        %v978 = vrot.slane %v604, %v977
        %v979 = vmul.f32 %v974, %v978
        %v980 = vlaneseq
        %v981 = vshrl.u32 %v980, 7
        %v982 = vsub.s32 2, %v981
        %v983 = vrot.slane %v604, %v982
        %v984 = vadd.f32 %v979, %v983
        %v985 = vpack.c.bf16 %v984, %v984
        %v986 = vld [vmem:[%s6] sm:$0xf]
        %v987 = vld [vmem:[%s6 + $0x4] sm:$0xf]
        %v988 = vld [vmem:[%s6 + $0x8] sm:$0xf]
        %v989 = vld [vmem:[%s6 + $0xc] sm:$0xf]
        %v990 = vld [vmem:[%s9] sm:$0x1]
        %v992 = vlaneseq
        %v993 = vshrl.u32 %v992, 7
        %v994 = vsub.s32 0, %v993
        %v995 = vrot.slane %v990, %v994
        %v1001 = vunpack.c.l.b16 %v986
        %v1002 = vunpack.c.l.b16 %v987
        %v1003 = vunpack.c.l.b16 %v988
        %v1004 = vunpack.c.l.b16 %v989
        %v1005 = vpack.c.b16 %v1002, %v1001
        %v1006 = vpack.c.b16 %v1004, %v1003
        %v1010 = vsel %vm622, %v985, 0
        %1012 = vmatprep.subr.bf16.mxu0 0
        %1013 = vmatpush1.bf16.msra.mxu0 %v1005
        %1014 = vmatprep.subr.bf16.mxu0 0
        %1015 = vmatpush1.bf16.msra.mxu0 %v1006
        %1016 = vmatprep.subr.bf16.mxu0 0
        %1017 = vmatpush1.bf16.msra.mxu0 0
        %1018 = vmatprep.subr.bf16.mxu0 0
        %1019 = vmatpush1.bf16.msra.mxu0 0
        %1020 = vmatprep.subr.bf16.mxu0 0
        %1021 = vmatpush1.bf16.msra.mxu0 0
        %1022 = vmatprep.subr.bf16.mxu0 0
        %1023 = vmatpush1.bf16.msra.mxu0 0
        %1024 = vmatprep.subr.bf16.mxu0 0
        %1025 = vmatpush1.bf16.msra.mxu0 0
        %1026 = vmatprep.subr.bf16.mxu0 0
        %1027 = vmatpush1.bf16.msra.mxu0 0
        %1028 = vmatprep.subr.bf16.mxu0 0
        %1029 = vmatpush1.bf16.msra.mxu0 0
        %1030 = vmatprep.subr.bf16.mxu0 0
        %1031 = vmatpush1.bf16.msra.mxu0 0
        %1032 = vmatprep.subr.bf16.mxu0 0
        %1033 = vmatpush1.bf16.msra.mxu0 0
        %1034 = vmatprep.subr.bf16.mxu0 0
        %1035 = vmatpush1.bf16.msra.mxu0 0
        %1036 = vmatprep.subr.bf16.mxu0 0
        %1037 = vmatpush1.bf16.msra.mxu0 0
        %1038 = vmatprep.subr.bf16.mxu0 0
        %1039 = vmatpush1.bf16.msra.mxu0 0
        %1040 = vmatprep.subr.bf16.mxu0 0
        %1041 = vmatpush1.bf16.msra.mxu0 0
        %1042 = vmatprep.subr.bf16.mxu0 0
        %1043 = vmatpush1.bf16.msra.mxu0 0
        %1044 = vmatprep.mubr.bf16.mxu0 0
        %1045 = vmatmul.mubr.bf16.gmra.mrb[0].mxu0 %v1010
        %v1046 = vpop.f32.mrb[0].mxu0
        %v1047 = vadd.f32 %v995, %v1046
        %v1048 = vpop.f32.mrb[0].mxu0
        %v1049 = vpop.f32.mrb[0].mxu0
        %v1050 = vpop.f32.mrb[0].mxu0
        %1051 = vdwg.mxu0
        %v1052 = vmax.f32 %v1047, 0.0
        %v1053 = vpack.c.bf16 %v1052, %v1052
        %v1054 = vld [vmem:[%s7] sm:$0xf]
        %v1055 = vld [vmem:[%s7 + $0x4] sm:$0xf]
        %v1056 = vld [vmem:[%s7 + $0x8] sm:$0xf]
        %v1057 = vld [vmem:[%s7 + $0xc] sm:$0xf]
        %v1058 = vld [vmem:[%s7 + $0x10] sm:$0xf]
        %v1059 = vld [vmem:[%s7 + $0x14] sm:$0xf]
        %v1060 = vld [vmem:[%s7 + $0x18] sm:$0xf]
        %v1061 = vld [vmem:[%s7 + $0x1c] sm:$0xf]
        %v1062 = vld [vmem:[%s7 + $0x20] sm:$0xf]
        %v1063 = vld [vmem:[%s7 + $0x24] sm:$0xf]
        %v1064 = vld [vmem:[%s7 + $0x28] sm:$0xf]
        %v1065 = vld [vmem:[%s7 + $0x2c] sm:$0xf]
        %v1066 = vld [vmem:[%s7 + $0x30] sm:$0xf]
        %v1067 = vld [vmem:[%s7 + $0x34] sm:$0xf]
        %v1068 = vld [vmem:[%s7 + $0x38] sm:$0xf]
        %v1069 = vld [vmem:[%s7 + $0x3c] sm:$0xf]
        %v1070 = vlaneseq
        %v1071 = vshrl.u32 %v1070, 7
        %v1072 = vsub.s32 3, %v1071
        %v1073 = vrot.slane %v604, %v1072
        %v1090 = vunpack.c.l.b16 %v1054
        %v1091 = vunpack.c.l.b16 %v1055
        %v1092 = vunpack.c.l.b16 %v1056
        %v1093 = vunpack.c.l.b16 %v1057
        %v1094 = vunpack.c.l.b16 %v1058
        %v1095 = vunpack.c.l.b16 %v1059
        %v1096 = vunpack.c.l.b16 %v1060
        %v1097 = vunpack.c.l.b16 %v1061
        %v1098 = vunpack.c.l.b16 %v1062
        %v1099 = vunpack.c.l.b16 %v1063
        %v1100 = vunpack.c.l.b16 %v1064
        %v1101 = vunpack.c.l.b16 %v1065
        %v1102 = vunpack.c.l.b16 %v1066
        %v1103 = vunpack.c.l.b16 %v1067
        %v1104 = vunpack.c.l.b16 %v1068
        %v1105 = vunpack.c.l.b16 %v1069
        %v1106 = vpack.c.b16 %v1091, %v1090
        %v1107 = vpack.c.b16 %v1093, %v1092
        %v1108 = vpack.c.b16 %v1095, %v1094
        %v1109 = vpack.c.b16 %v1097, %v1096
        %v1110 = vpack.c.b16 %v1099, %v1098
        %v1111 = vpack.c.b16 %v1101, %v1100
        %v1112 = vpack.c.b16 %v1103, %v1102
        %v1113 = vpack.c.b16 %v1105, %v1104
        %1122 = vmatprep.subr.bf16.mxu0 0
        %1123 = vmatpush1.bf16.msra.mxu0 %v1106
        %1124 = vmatprep.subr.bf16.mxu0 0
        %1125 = vmatpush1.bf16.msra.mxu0 %v1107
        %1126 = vmatprep.subr.bf16.mxu0 0
        %1127 = vmatpush1.bf16.msra.mxu0 %v1108
        %1128 = vmatprep.subr.bf16.mxu0 0
        %1129 = vmatpush1.bf16.msra.mxu0 %v1109
        %1130 = vmatprep.subr.bf16.mxu0 0
        %1131 = vmatpush1.bf16.msra.mxu0 %v1110
        %1132 = vmatprep.subr.bf16.mxu0 0
        %1133 = vmatpush1.bf16.msra.mxu0 %v1111
        %1134 = vmatprep.subr.bf16.mxu0 0
        %1135 = vmatpush1.bf16.msra.mxu0 %v1112
        %1136 = vmatprep.subr.bf16.mxu0 0
        %1137 = vmatpush1.bf16.msra.mxu0 %v1113
        %1138 = vmatprep.subr.bf16.mxu0 0
        %1139 = vmatpush1.bf16.msra.mxu0 0
        %1140 = vmatprep.subr.bf16.mxu0 0
        %1141 = vmatpush1.bf16.msra.mxu0 0
        %1142 = vmatprep.subr.bf16.mxu0 0
        %1143 = vmatpush1.bf16.msra.mxu0 0
        %1144 = vmatprep.subr.bf16.mxu0 0
        %1145 = vmatpush1.bf16.msra.mxu0 0
        %1146 = vmatprep.subr.bf16.mxu0 0
        %1147 = vmatpush1.bf16.msra.mxu0 0
        %1148 = vmatprep.subr.bf16.mxu0 0
        %1149 = vmatpush1.bf16.msra.mxu0 0
        %1150 = vmatprep.subr.bf16.mxu0 0
        %1151 = vmatpush1.bf16.msra.mxu0 0
        %1152 = vmatprep.subr.bf16.mxu0 0
        %1153 = vmatpush1.bf16.msra.mxu0 0
        %1154 = vmatprep.mubr.bf16.mxu0 0
        %1155 = vmatmul.mubr.bf16.gmra.mrb[0].mxu0 %v1053
        %v1156 = vpop.f32.mrb[0].mxu0
        %v1157 = vadd.f32 %v1073, %v1156
        %v1158 = vpop.f32.mrb[0].mxu0
        %v1159 = vpop.f32.mrb[0].mxu0
        %v1160 = vpop.f32.mrb[0].mxu0
        %1161 = vdwg.mxu0
        %v1162 = vadd.f32 %v1157, %v984
        %v1163 = vsel %vm622, %v1162, 0.0
        %1164 = vadd.xlane.f32.xlu0 %v1163
        %v1165 = vpop.xlane.xlu0 %1164
        %v1166 = vmul.f32 %v1165, %v964
        %v1167 = vsub.f32 %v1162, %v1166
        %v1168 = vmul.f32 %v1167, %v1167
        %v1169 = vsel %vm622, %v1168, 0.0
        %1170 = vadd.xlane.f32.xlu0 %v1169
        %v1171 = vpop.xlane.xlu0 %1170
        %v1172 = vmul.f32 %v1171, %v964
        %v1173 = vadd.f32 %v1172, 1e-05
        %v1174 = vrsqrt.pop %v1173
        %v1175 = vmul.f32 %v1167, %v1174
        %v1176 = vlaneseq
        %v1177 = vshrl.u32 %v1176, 7
        %v1178 = vsub.s32 4, %v1177
        %v1179 = vrot.slane %v604, %v1178
        %v1180 = vmul.f32 %v1175, %v1179
        %v1181 = vlaneseq
        %v1182 = vshrl.u32 %v1181, 7
        %v1183 = vsub.s32 5, %v1182
        %v1184 = vrot.slane %v604, %v1183
        %v1185 = vadd.f32 %v1180, %v1184
        %s1186 = scalar_lea.vmem %s8, 8
        %v1187 = vld [vmem:[%s1186] sm:$0x3f]
        %v1188 = vpack.c.bf16 %v1185, %v1185
        %s1189 = scalar_lea.vmem %s4, 16
        %v1190 = vld [vmem:[%s1189] sm:$0xf]
        %v1191 = vld [vmem:[%s1189 + $0x4] sm:$0xf]
        %v1192 = vld [vmem:[%s1189 + $0x8] sm:$0xf]
        %v1193 = vld [vmem:[%s1189 + $0xc] sm:$0xf]
        %v1198 = vunpack.c.l.b16 %v1190
        %v1199 = vunpack.c.l.b16 %v1191
        %v1200 = vunpack.c.l.b16 %v1192
        %v1201 = vunpack.c.l.b16 %v1193
        %v1202 = vpack.c.b16 %v1199, %v1198
        %v1203 = vpack.c.b16 %v1201, %v1200
        %v1207 = vsel %vm622, %v1188, 0
        %1209 = vmatprep.subr.bf16.mxu0 0
        %1210 = vmatpush1.bf16.msra.mxu0 %v1202
        %1211 = vmatprep.subr.bf16.mxu0 0
        %1212 = vmatpush1.bf16.msra.mxu0 %v1203
        %1213 = vmatprep.subr.bf16.mxu0 0
        %1214 = vmatpush1.bf16.msra.mxu0 0
        %1215 = vmatprep.subr.bf16.mxu0 0
        %1216 = vmatpush1.bf16.msra.mxu0 0
        %1217 = vmatprep.subr.bf16.mxu0 0
        %1218 = vmatpush1.bf16.msra.mxu0 0
        %1219 = vmatprep.subr.bf16.mxu0 0
        %1220 = vmatpush1.bf16.msra.mxu0 0
        %1221 = vmatprep.subr.bf16.mxu0 0
        %1222 = vmatpush1.bf16.msra.mxu0 0
        %1223 = vmatprep.subr.bf16.mxu0 0
        %1224 = vmatpush1.bf16.msra.mxu0 0
        %1225 = vmatprep.subr.bf16.mxu0 0
        %1226 = vmatpush1.bf16.msra.mxu0 0
        %1227 = vmatprep.subr.bf16.mxu0 0
        %1228 = vmatpush1.bf16.msra.mxu0 0
        %1229 = vmatprep.subr.bf16.mxu0 0
        %1230 = vmatpush1.bf16.msra.mxu0 0
        %1231 = vmatprep.subr.bf16.mxu0 0
        %1232 = vmatpush1.bf16.msra.mxu0 0
        %1233 = vmatprep.subr.bf16.mxu0 0
        %1234 = vmatpush1.bf16.msra.mxu0 0
        %1235 = vmatprep.subr.bf16.mxu0 0
        %1236 = vmatpush1.bf16.msra.mxu0 0
        %1237 = vmatprep.subr.bf16.mxu0 0
        %1238 = vmatpush1.bf16.msra.mxu0 0
        %1239 = vmatprep.subr.bf16.mxu0 0
        %1240 = vmatpush1.bf16.msra.mxu0 0
        %1241 = vmatprep.mubr.bf16.mxu0 0
        %1242 = vmatmul.mubr.bf16.gmra.mrb[0].mxu0 %v1207
        %v1243 = vpop.f32.mrb[0].mxu0
        %v1244 = vadd.f32 0.0, %v1243
        %v1245 = vpop.f32.mrb[0].mxu0
        %v1246 = vpop.f32.mrb[0].mxu0
        %v1247 = vpop.f32.mrb[0].mxu0
        %1248 = vdwg.mxu0
        %v1249 = vmul.f32 %v1244, 0.17677669
        %v1250 = vmul.f32 %v1244, %v672
        %v1251 = vmul.f32 %v1244, %v674
        %v1252 = vmul.f32 %v1244, %v676
        %v1253 = vmul.f32 %v1244, %v678
        %v1254 = vmul.f32 %v1244, %v688
        %v1255 = vmul.f32 %v1244, %v690
        %v1256 = vmul.f32 %v1244, %v692
        %v1257 = vmul.f32 %v1244, %v694
        %v1258 = vpack.c.bf16 %v1249, %v1249
        %v1259 = vpack.c.bf16 %v1251, %v1250
        %v1260 = vpack.c.bf16 %v1253, %v1252
        %1263 = vrot.lane.b32.xlu0 %v1259, 96
        %v1264 = vpop.permute.xlu0 %1263
        %1265 = vrot.lane.b32.xlu0 %v1260, 96
        %v1266 = vpop.permute.xlu0 %1265
        %v1268 = vsel %vm622, %v1258, 0
        %v1271 = vsel %vm622, %v1264, 0
        %v1274 = vsel %vm622, %v1266, 0
        %1276 = vmatprep.subr.bf16.mxu0 0
        %1277 = vmatpush1.bf16.xpose.msra.mxu0 %v1271
        %1278 = vmatprep.subr.bf16.mxu0 0
        %1279 = vmatpush1.bf16.xpose.msra.mxu0 %v1274
        %1280 = vmatprep.subr.bf16.mxu0 0
        %1281 = vmatpush1.bf16.xpose.msra.mxu0 0
        %1282 = vmatprep.subr.bf16.mxu0 0
        %1283 = vmatpush1.bf16.xpose.msra.mxu0 0
        %1284 = vmatprep.subr.bf16.mxu0 0
        %1285 = vmatpush1.bf16.xpose.msra.mxu0 0
        %1286 = vmatprep.subr.bf16.mxu0 0
        %1287 = vmatpush1.bf16.xpose.msra.mxu0 0
        %1288 = vmatprep.subr.bf16.mxu0 0
        %1289 = vmatpush1.bf16.xpose.msra.mxu0 0
        %1290 = vmatprep.subr.bf16.mxu0 0
        %1291 = vmatpush1.bf16.xpose.msra.mxu0 0
        %1292 = vmatprep.subr.bf16.mxu0 0
        %1293 = vmatpush1.bf16.xpose.msra.mxu0 0
        %1294 = vmatprep.subr.bf16.mxu0 0
        %1295 = vmatpush1.bf16.xpose.msra.mxu0 0
        %1296 = vmatprep.subr.bf16.mxu0 0
        %1297 = vmatpush1.bf16.xpose.msra.mxu0 0
        %1298 = vmatprep.subr.bf16.mxu0 0
        %1299 = vmatpush1.bf16.xpose.msra.mxu0 0
        %1300 = vmatprep.subr.bf16.mxu0 0
        %1301 = vmatpush1.bf16.xpose.msra.mxu0 0
        %1302 = vmatprep.subr.bf16.mxu0 0
        %1303 = vmatpush1.bf16.xpose.msra.mxu0 0
        %1304 = vmatprep.subr.bf16.mxu0 0
        %1305 = vmatpush1.bf16.xpose.msra.mxu0 0
        %1306 = vmatprep.subr.bf16.mxu0 0
        %1307 = vmatpush1.bf16.xpose.msra.mxu0 0
        %1308 = vmatprep.mubr.bf16.mxu0 0
        %1309 = vmatmul.mubr.bf16.gmra.mrb[0].mxu0 %v1268
        %v1310 = vpop.f32.mrb[0].mxu0
        %v1311 = vadd.f32 0.0, %v1310
        %v1312 = vpop.f32.mrb[0].mxu0
        %v1313 = vpop.f32.mrb[0].mxu0
        %v1314 = vpop.f32.mrb[0].mxu0
        %1315 = vdwg.mxu0
        %v1316 = vsel %vm622, %v1311, -inf
        %1317 = vmax.xlane.f32.xlu0 %v1316
        %v1318 = vpop.xlane.xlu0 %1317
        %v1319 = vsub.f32 %v1311, %v1318
        %v1320 = vmul.f32 %v1319, 1.442695
        %v1321 = vpow.pop %v1320
        %v1323 = vsel %vm622, %v1321, 0
        %1325 = vmatprep.subr.mxu0 0.0
        %1326 = vmatpush1.msra.mxu0 %v600
        %1327 = vmatprep.subr.mxu0 0.0
        %1328 = vmatpush1.msra.mxu0 %v601
        %1329 = vmatprep.subr.mxu0 0.0
        %1330 = vmatpush1.msra.mxu0 %v602
        %1331 = vmatprep.subr.mxu0 0.0
        %1332 = vmatpush1.msra.mxu0 %v603
        %1333 = vmatprep.subr.mxu0 0.0
        %1334 = vmatpush1.msra.mxu0 0.0
        %1335 = vmatprep.subr.mxu0 0.0
        %1336 = vmatpush1.msra.mxu0 0.0
        %1337 = vmatprep.subr.mxu0 0.0
        %1338 = vmatpush1.msra.mxu0 0.0
        %1339 = vmatprep.subr.mxu0 0.0
        %1340 = vmatpush1.msra.mxu0 0.0
        %1341 = vmatprep.subr.mxu0 0.0
        %1342 = vmatpush1.msra.mxu0 0.0
        %1343 = vmatprep.subr.mxu0 0.0
        %1344 = vmatpush1.msra.mxu0 0.0
        %1345 = vmatprep.subr.mxu0 0.0
        %1346 = vmatpush1.msra.mxu0 0.0
        %1347 = vmatprep.subr.mxu0 0.0
        %1348 = vmatpush1.msra.mxu0 0.0
        %1349 = vmatprep.subr.mxu0 0.0
        %1350 = vmatpush1.msra.mxu0 0.0
        %1351 = vmatprep.subr.mxu0 0.0
        %1352 = vmatpush1.msra.mxu0 0.0
        %1353 = vmatprep.subr.mxu0 0.0
        %1354 = vmatpush1.msra.mxu0 0.0
        %1355 = vmatprep.subr.mxu0 0.0
        %1356 = vmatpush1.msra.mxu0 0.0
        %1357 = vmatprep.subr.mxu0 0.0
        %1358 = vmatpush1.msra.mxu0 0.0
        %1359 = vmatprep.subr.mxu0 0.0
        %1360 = vmatpush1.msra.mxu0 0.0
        %1361 = vmatprep.subr.mxu0 0.0
        %1362 = vmatpush1.msra.mxu0 0.0
        %1363 = vmatprep.subr.mxu0 0.0
        %1364 = vmatpush1.msra.mxu0 0.0
        %1365 = vmatprep.subr.mxu0 0.0
        %1366 = vmatpush1.msra.mxu0 0.0
        %1367 = vmatprep.subr.mxu0 0.0
        %1368 = vmatpush1.msra.mxu0 0.0
        %1369 = vmatprep.subr.mxu0 0.0
        %1370 = vmatpush1.msra.mxu0 0.0
        %1371 = vmatprep.subr.mxu0 0.0
        %1372 = vmatpush1.msra.mxu0 0.0
        %1373 = vmatprep.subr.mxu0 0.0
        %1374 = vmatpush1.msra.mxu0 0.0
        %1375 = vmatprep.subr.mxu0 0.0
        %1376 = vmatpush1.msra.mxu0 0.0
        %1377 = vmatprep.subr.mxu0 0.0
        %1378 = vmatpush1.msra.mxu0 0.0
        %1379 = vmatprep.subr.mxu0 0.0
        %1380 = vmatpush1.msra.mxu0 0.0
        %1381 = vmatprep.subr.mxu0 0.0
        %1382 = vmatpush1.msra.mxu0 0.0
        %1383 = vmatprep.subr.mxu0 0.0
        %1384 = vmatpush1.msra.mxu0 0.0
        %1385 = vmatprep.subr.mxu0 0.0
        %1386 = vmatpush1.msra.mxu0 0.0
        %1387 = vmatprep.subr.mxu0 0.0
        %1388 = vmatpush1.msra.mxu0 0.0
        %1389 = vmatprep.mubr.f32.mxu0 0.0
        %1390 = vmatmul.mubr.f32.gmra.mrb[0].mxu0 %v1323
        %v1391 = vpop.f32.mrb[0].mxu0
        %v1392 = vadd.f32 0.0, %v1391
        %v1393 = vpop.f32.mrb[0].mxu0
        %1394 = vdwg.mxu0
        %v1395 = vrcp.pop %v1392
        %v1396 = vmul.f32 %v1321, %v1395
        %v1397 = vpack.c.bf16 %v1396, %v1396
        %v1398 = vpack.c.bf16 %v1255, %v1254
        %v1399 = vpack.c.bf16 %v1257, %v1256
        %1402 = vrot.lane.b32.xlu0 %v1398, 64
        %v1403 = vpop.permute.xlu0 %1402
        %1404 = vrot.lane.b32.xlu0 %v1399, 64
        %v1405 = vpop.permute.xlu0 %1404
        %v1409 = vsel %vm622, %v1397, 0
        %1411 = vmatprep.subr.bf16.mxu0 0
        %1412 = vmatpush1.bf16.msra.mxu0 %v1403
        %1413 = vmatprep.subr.bf16.mxu0 0
        %1414 = vmatpush1.bf16.msra.mxu0 %v1405
        %1415 = vmatprep.subr.bf16.mxu0 0
        %1416 = vmatpush1.bf16.msra.mxu0 0
        %1417 = vmatprep.subr.bf16.mxu0 0
        %1418 = vmatpush1.bf16.msra.mxu0 0
        %1419 = vmatprep.subr.bf16.mxu0 0
        %1420 = vmatpush1.bf16.msra.mxu0 0
        %1421 = vmatprep.subr.bf16.mxu0 0
        %1422 = vmatpush1.bf16.msra.mxu0 0
        %1423 = vmatprep.subr.bf16.mxu0 0
        %1424 = vmatpush1.bf16.msra.mxu0 0
        %1425 = vmatprep.subr.bf16.mxu0 0
        %1426 = vmatpush1.bf16.msra.mxu0 0
        %1427 = vmatprep.subr.bf16.mxu0 0
        %1428 = vmatpush1.bf16.msra.mxu0 0
        %1429 = vmatprep.subr.bf16.mxu0 0
        %1430 = vmatpush1.bf16.msra.mxu0 0
        %1431 = vmatprep.subr.bf16.mxu0 0
        %1432 = vmatpush1.bf16.msra.mxu0 0
        %1433 = vmatprep.subr.bf16.mxu0 0
        %1434 = vmatpush1.bf16.msra.mxu0 0
        %1435 = vmatprep.subr.bf16.mxu0 0
        %1436 = vmatpush1.bf16.msra.mxu0 0
        %1437 = vmatprep.subr.bf16.mxu0 0
        %1438 = vmatpush1.bf16.msra.mxu0 0
        %1439 = vmatprep.subr.bf16.mxu0 0
        %1440 = vmatpush1.bf16.msra.mxu0 0
        %1441 = vmatprep.subr.bf16.mxu0 0
        %1442 = vmatpush1.bf16.msra.mxu0 0
        %1443 = vmatprep.mubr.bf16.mxu0 0
        %1444 = vmatmul.mubr.bf16.gmra.mrb[0].mxu0 %v1409
        %v1445 = vpop.f32.mrb[0].mxu0
        %v1446 = vadd.f32 0.0, %v1445
        %v1447 = vpop.f32.mrb[0].mxu0
        %v1448 = vpop.f32.mrb[0].mxu0
        %v1449 = vpop.f32.mrb[0].mxu0
        %1450 = vdwg.mxu0
        %v1451 = vpack.c.bf16 %v1446, %v1446
        %s1452 = scalar_lea.vmem %s5, 16
        %v1453 = vld [vmem:[%s1452] sm:$0xf]
        %v1454 = vld [vmem:[%s1452 + $0x4] sm:$0xf]
        %v1455 = vld [vmem:[%s1452 + $0x8] sm:$0xf]
        %v1456 = vld [vmem:[%s1452 + $0xc] sm:$0xf]
        %v1457 = vlaneseq
        %v1458 = vshrl.u32 %v1457, 7
        %v1459 = vsub.s32 0, %v1458
        %v1460 = vrot.slane %v1187, %v1459
        %v1465 = vunpack.c.l.b16 %v1453
        %v1466 = vunpack.c.l.b16 %v1454
        %v1467 = vunpack.c.l.b16 %v1455
        %v1468 = vunpack.c.l.b16 %v1456
        %v1469 = vpack.c.b16 %v1466, %v1465
        %v1470 = vpack.c.b16 %v1468, %v1467
        %v1474 = vsel %vm622, %v1451, 0
        %1476 = vmatprep.subr.bf16.mxu0 0
        %1477 = vmatpush1.bf16.msra.mxu0 %v1469
        %1478 = vmatprep.subr.bf16.mxu0 0
        %1479 = vmatpush1.bf16.msra.mxu0 %v1470
        %1480 = vmatprep.subr.bf16.mxu0 0
        %1481 = vmatpush1.bf16.msra.mxu0 0
        %1482 = vmatprep.subr.bf16.mxu0 0
        %1483 = vmatpush1.bf16.msra.mxu0 0
        %1484 = vmatprep.subr.bf16.mxu0 0
        %1485 = vmatpush1.bf16.msra.mxu0 0
        %1486 = vmatprep.subr.bf16.mxu0 0
        %1487 = vmatpush1.bf16.msra.mxu0 0
        %1488 = vmatprep.subr.bf16.mxu0 0
        %1489 = vmatpush1.bf16.msra.mxu0 0
        %1490 = vmatprep.subr.bf16.mxu0 0
        %1491 = vmatpush1.bf16.msra.mxu0 0
        %1492 = vmatprep.subr.bf16.mxu0 0
        %1493 = vmatpush1.bf16.msra.mxu0 0
        %1494 = vmatprep.subr.bf16.mxu0 0
        %1495 = vmatpush1.bf16.msra.mxu0 0
        %1496 = vmatprep.subr.bf16.mxu0 0
        %1497 = vmatpush1.bf16.msra.mxu0 0
        %1498 = vmatprep.subr.bf16.mxu0 0
        %1499 = vmatpush1.bf16.msra.mxu0 0
        %1500 = vmatprep.subr.bf16.mxu0 0
        %1501 = vmatpush1.bf16.msra.mxu0 0
        %1502 = vmatprep.subr.bf16.mxu0 0
        %1503 = vmatpush1.bf16.msra.mxu0 0
        %1504 = vmatprep.subr.bf16.mxu0 0
        %1505 = vmatpush1.bf16.msra.mxu0 0
        %1506 = vmatprep.subr.bf16.mxu0 0
        %1507 = vmatpush1.bf16.msra.mxu0 0
        %1508 = vmatprep.mubr.bf16.mxu0 0
        %1509 = vmatmul.mubr.bf16.gmra.mrb[0].mxu0 %v1474
        %v1510 = vpop.f32.mrb[0].mxu0
        %v1511 = vadd.f32 %v1460, %v1510
        %v1512 = vpop.f32.mrb[0].mxu0
        %v1513 = vpop.f32.mrb[0].mxu0
        %v1514 = vpop.f32.mrb[0].mxu0
        %1515 = vdwg.mxu0
        %v1516 = vmul.f32 %v1511, %v1185
        %v1517 = vsel %vm622, %v1516, 0.0
        %1518 = vadd.xlane.f32.xlu0 %v1517
        %v1519 = vpop.xlane.xlu0 %1518
        %v1520 = vmul.f32 %v1519, %v964
        %v1521 = vsub.f32 %v1516, %v1520
        %v1522 = vmul.f32 %v1521, %v1521
        %v1523 = vsel %vm622, %v1522, 0.0
        %1524 = vadd.xlane.f32.xlu0 %v1523
        %v1525 = vpop.xlane.xlu0 %1524
        %v1526 = vmul.f32 %v1525, %v964
        %v1527 = vadd.f32 %v1526, 1e-05
        %v1528 = vrsqrt.pop %v1527
        %v1529 = vmul.f32 %v1521, %v1528
        %v1530 = vlaneseq
        %v1531 = vshrl.u32 %v1530, 7
        %v1532 = vsub.s32 1, %v1531
        %v1533 = vrot.slane %v1187, %v1532
        %v1534 = vmul.f32 %v1529, %v1533
        %v1535 = vlaneseq
        %v1536 = vshrl.u32 %v1535, 7
        %v1537 = vsub.s32 2, %v1536
        %v1538 = vrot.slane %v1187, %v1537
        %v1539 = vadd.f32 %v1534, %v1538
        %v1540 = vpack.c.bf16 %v1539, %v1539
        %s1541 = scalar_lea.vmem %s6, 16
        %v1542 = vld [vmem:[%s1541] sm:$0xf]
        %v1543 = vld [vmem:[%s1541 + $0x4] sm:$0xf]
        %v1544 = vld [vmem:[%s1541 + $0x8] sm:$0xf]
        %v1545 = vld [vmem:[%s1541 + $0xc] sm:$0xf]
        %s1546 = scalar_lea.vmem %s9, 1
        %v1547 = vld [vmem:[%s1546] sm:$0x1]
        %v1549 = vlaneseq
        %v1550 = vshrl.u32 %v1549, 7
        %v1551 = vsub.s32 0, %v1550
        %v1552 = vrot.slane %v1547, %v1551
        %v1558 = vunpack.c.l.b16 %v1542
        %v1559 = vunpack.c.l.b16 %v1543
        %v1560 = vunpack.c.l.b16 %v1544
        %v1561 = vunpack.c.l.b16 %v1545
        %v1562 = vpack.c.b16 %v1559, %v1558
        %v1563 = vpack.c.b16 %v1561, %v1560
        %v1567 = vsel %vm622, %v1540, 0
        %1569 = vmatprep.subr.bf16.mxu0 0
        %1570 = vmatpush1.bf16.msra.mxu0 %v1562
        %1571 = vmatprep.subr.bf16.mxu0 0
        %1572 = vmatpush1.bf16.msra.mxu0 %v1563
        %1573 = vmatprep.subr.bf16.mxu0 0
        %1574 = vmatpush1.bf16.msra.mxu0 0
        %1575 = vmatprep.subr.bf16.mxu0 0
        %1576 = vmatpush1.bf16.msra.mxu0 0
        %1577 = vmatprep.subr.bf16.mxu0 0
        %1578 = vmatpush1.bf16.msra.mxu0 0
        %1579 = vmatprep.subr.bf16.mxu0 0
        %1580 = vmatpush1.bf16.msra.mxu0 0
        %1581 = vmatprep.subr.bf16.mxu0 0
        %1582 = vmatpush1.bf16.msra.mxu0 0
        %1583 = vmatprep.subr.bf16.mxu0 0
        %1584 = vmatpush1.bf16.msra.mxu0 0
        %1585 = vmatprep.subr.bf16.mxu0 0
        %1586 = vmatpush1.bf16.msra.mxu0 0
        %1587 = vmatprep.subr.bf16.mxu0 0
        %1588 = vmatpush1.bf16.msra.mxu0 0
        %1589 = vmatprep.subr.bf16.mxu0 0
        %1590 = vmatpush1.bf16.msra.mxu0 0
        %1591 = vmatprep.subr.bf16.mxu0 0
        %1592 = vmatpush1.bf16.msra.mxu0 0
        %1593 = vmatprep.subr.bf16.mxu0 0
        %1594 = vmatpush1.bf16.msra.mxu0 0
        %1595 = vmatprep.subr.bf16.mxu0 0
        %1596 = vmatpush1.bf16.msra.mxu0 0
        %1597 = vmatprep.subr.bf16.mxu0 0
        %1598 = vmatpush1.bf16.msra.mxu0 0
        %1599 = vmatprep.subr.bf16.mxu0 0
        %1600 = vmatpush1.bf16.msra.mxu0 0
        %1601 = vmatprep.mubr.bf16.mxu0 0
        %1602 = vmatmul.mubr.bf16.gmra.mrb[0].mxu0 %v1567
        %v1603 = vpop.f32.mrb[0].mxu0
        %v1604 = vadd.f32 %v1552, %v1603
        %v1605 = vpop.f32.mrb[0].mxu0
        %v1606 = vpop.f32.mrb[0].mxu0
        %v1607 = vpop.f32.mrb[0].mxu0
        %1608 = vdwg.mxu0
        %v1609 = vmax.f32 %v1604, 0.0
        %v1610 = vpack.c.bf16 %v1609, %v1609
        %s1611 = scalar_lea.vmem %s7, 64
        %v1612 = vld [vmem:[%s1611] sm:$0xf]
        %v1613 = vld [vmem:[%s1611 + $0x4] sm:$0xf]
        %v1614 = vld [vmem:[%s1611 + $0x8] sm:$0xf]
        %v1615 = vld [vmem:[%s1611 + $0xc] sm:$0xf]
        %v1616 = vld [vmem:[%s1611 + $0x10] sm:$0xf]
        %v1617 = vld [vmem:[%s1611 + $0x14] sm:$0xf]
        %v1618 = vld [vmem:[%s1611 + $0x18] sm:$0xf]
        %v1619 = vld [vmem:[%s1611 + $0x1c] sm:$0xf]
        %v1620 = vld [vmem:[%s1611 + $0x20] sm:$0xf]
        %v1621 = vld [vmem:[%s1611 + $0x24] sm:$0xf]
        %v1622 = vld [vmem:[%s1611 + $0x28] sm:$0xf]
        %v1623 = vld [vmem:[%s1611 + $0x2c] sm:$0xf]
        %v1624 = vld [vmem:[%s1611 + $0x30] sm:$0xf]
        %v1625 = vld [vmem:[%s1611 + $0x34] sm:$0xf]
        %v1626 = vld [vmem:[%s1611 + $0x38] sm:$0xf]
        %v1627 = vld [vmem:[%s1611 + $0x3c] sm:$0xf]
        %v1628 = vlaneseq
        %v1629 = vshrl.u32 %v1628, 7
        %v1630 = vsub.s32 3, %v1629
        %v1631 = vrot.slane %v1187, %v1630
        %v1648 = vunpack.c.l.b16 %v1612
        %v1649 = vunpack.c.l.b16 %v1613
        %v1650 = vunpack.c.l.b16 %v1614
        %v1651 = vunpack.c.l.b16 %v1615
        %v1652 = vunpack.c.l.b16 %v1616
        %v1653 = vunpack.c.l.b16 %v1617
        %v1654 = vunpack.c.l.b16 %v1618
        %v1655 = vunpack.c.l.b16 %v1619
        %v1656 = vunpack.c.l.b16 %v1620
        %v1657 = vunpack.c.l.b16 %v1621
        %v1658 = vunpack.c.l.b16 %v1622
        %v1659 = vunpack.c.l.b16 %v1623
        %v1660 = vunpack.c.l.b16 %v1624
        %v1661 = vunpack.c.l.b16 %v1625
        %v1662 = vunpack.c.l.b16 %v1626
        %v1663 = vunpack.c.l.b16 %v1627
        %v1664 = vpack.c.b16 %v1649, %v1648
        %v1665 = vpack.c.b16 %v1651, %v1650
        %v1666 = vpack.c.b16 %v1653, %v1652
        %v1667 = vpack.c.b16 %v1655, %v1654
        %v1668 = vpack.c.b16 %v1657, %v1656
        %v1669 = vpack.c.b16 %v1659, %v1658
        %v1670 = vpack.c.b16 %v1661, %v1660
        %v1671 = vpack.c.b16 %v1663, %v1662
        %1680 = vmatprep.subr.bf16.mxu0 0
        %1681 = vmatpush1.bf16.msra.mxu0 %v1664
        %1682 = vmatprep.subr.bf16.mxu0 0
        %1683 = vmatpush1.bf16.msra.mxu0 %v1665
        %1684 = vmatprep.subr.bf16.mxu0 0
        %1685 = vmatpush1.bf16.msra.mxu0 %v1666
        %1686 = vmatprep.subr.bf16.mxu0 0
        %1687 = vmatpush1.bf16.msra.mxu0 %v1667
        %1688 = vmatprep.subr.bf16.mxu0 0
        %1689 = vmatpush1.bf16.msra.mxu0 %v1668
        %1690 = vmatprep.subr.bf16.mxu0 0
        %1691 = vmatpush1.bf16.msra.mxu0 %v1669
        %1692 = vmatprep.subr.bf16.mxu0 0
        %1693 = vmatpush1.bf16.msra.mxu0 %v1670
        %1694 = vmatprep.subr.bf16.mxu0 0
        %1695 = vmatpush1.bf16.msra.mxu0 %v1671
        %1696 = vmatprep.subr.bf16.mxu0 0
        %1697 = vmatpush1.bf16.msra.mxu0 0
        %1698 = vmatprep.subr.bf16.mxu0 0
        %1699 = vmatpush1.bf16.msra.mxu0 0
        %1700 = vmatprep.subr.bf16.mxu0 0
        %1701 = vmatpush1.bf16.msra.mxu0 0
        %1702 = vmatprep.subr.bf16.mxu0 0
        %1703 = vmatpush1.bf16.msra.mxu0 0
        %1704 = vmatprep.subr.bf16.mxu0 0
        %1705 = vmatpush1.bf16.msra.mxu0 0
        %1706 = vmatprep.subr.bf16.mxu0 0
        %1707 = vmatpush1.bf16.msra.mxu0 0
        %1708 = vmatprep.subr.bf16.mxu0 0
        %1709 = vmatpush1.bf16.msra.mxu0 0
        %1710 = vmatprep.subr.bf16.mxu0 0
        %1711 = vmatpush1.bf16.msra.mxu0 0
        %1712 = vmatprep.mubr.bf16.mxu0 0
        %1713 = vmatmul.mubr.bf16.gmra.mrb[0].mxu0 %v1610
        %v1714 = vpop.f32.mrb[0].mxu0
        %v1715 = vadd.f32 %v1631, %v1714
        %v1716 = vpop.f32.mrb[0].mxu0
        %v1717 = vpop.f32.mrb[0].mxu0
        %v1718 = vpop.f32.mrb[0].mxu0
        %1719 = vdwg.mxu0
        %v1720 = vadd.f32 %v1715, %v1539
        %v1721 = vsel %vm622, %v1720, 0.0
        %1722 = vadd.xlane.f32.xlu0 %v1721
        %v1723 = vpop.xlane.xlu0 %1722
        %v1724 = vmul.f32 %v1723, %v964
        %v1725 = vsub.f32 %v1720, %v1724
        %v1726 = vmul.f32 %v1725, %v1725
        %v1727 = vsel %vm622, %v1726, 0.0
        %1728 = vadd.xlane.f32.xlu0 %v1727
        %v1729 = vpop.xlane.xlu0 %1728
        %v1730 = vmul.f32 %v1729, %v964
        %v1731 = vadd.f32 %v1730, 1e-05
        %v1732 = vrsqrt.pop %v1731
        %v1733 = vmul.f32 %v1725, %v1732
        %v1734 = vlaneseq
        %v1735 = vshrl.u32 %v1734, 7
        %v1736 = vsub.s32 4, %v1735
        %v1737 = vrot.slane %v1187, %v1736
        %v1738 = vmul.f32 %v1733, %v1737
        %v1739 = vlaneseq
        %v1740 = vshrl.u32 %v1739, 7
        %v1741 = vsub.s32 5, %v1740
        %v1742 = vrot.slane %v1187, %v1741
        %v1743 = vadd.f32 %v1738, %v1742
        %v1744 = vld [vmem:[%s10] sm:$0xff]
        %v1745 = vld [vmem:[%s10 + $0x8] sm:$0xff]
        %v1746 = vld [vmem:[%s10 + $0x10] sm:$0xff]
        %v1747 = vld [vmem:[%s10 + $0x18] sm:$0xff]
        %v1748 = vld [vmem:[%s11] sm:$0x1]
        %v1750 = vlaneseq
        %v1751 = vshrl.u32 %v1750, 7
        %v1752 = vsub.s32 0, %v1751
        %v1753 = vrot.slane %v1748, %v1752
        %v1756 = vsel %vm622, %v1743, 0
        %1758 = vmatprep.subr.mxu0 0.0
        %1759 = vmatpush1.msra.mxu0 %v1744
        %1760 = vmatprep.subr.mxu0 0.0
        %1761 = vmatpush1.msra.mxu0 %v1745
        %1762 = vmatprep.subr.mxu0 0.0
        %1763 = vmatpush1.msra.mxu0 %v1746
        %1764 = vmatprep.subr.mxu0 0.0
        %1765 = vmatpush1.msra.mxu0 %v1747
        %1766 = vmatprep.subr.mxu0 0.0
        %1767 = vmatpush1.msra.mxu0 0.0
        %1768 = vmatprep.subr.mxu0 0.0
        %1769 = vmatpush1.msra.mxu0 0.0
        %1770 = vmatprep.subr.mxu0 0.0
        %1771 = vmatpush1.msra.mxu0 0.0
        %1772 = vmatprep.subr.mxu0 0.0
        %1773 = vmatpush1.msra.mxu0 0.0
        %1774 = vmatprep.subr.mxu0 0.0
        %1775 = vmatpush1.msra.mxu0 0.0
        %1776 = vmatprep.subr.mxu0 0.0
        %1777 = vmatpush1.msra.mxu0 0.0
        %1778 = vmatprep.subr.mxu0 0.0
        %1779 = vmatpush1.msra.mxu0 0.0
        %1780 = vmatprep.subr.mxu0 0.0
        %1781 = vmatpush1.msra.mxu0 0.0
        %1782 = vmatprep.subr.mxu0 0.0
        %1783 = vmatpush1.msra.mxu0 0.0
        %1784 = vmatprep.subr.mxu0 0.0
        %1785 = vmatpush1.msra.mxu0 0.0
        %1786 = vmatprep.subr.mxu0 0.0
        %1787 = vmatpush1.msra.mxu0 0.0
        %1788 = vmatprep.subr.mxu0 0.0
        %1789 = vmatpush1.msra.mxu0 0.0
        %1790 = vmatprep.subr.mxu0 0.0
        %1791 = vmatpush1.msra.mxu0 0.0
        %1792 = vmatprep.subr.mxu0 0.0
        %1793 = vmatpush1.msra.mxu0 0.0
        %1794 = vmatprep.subr.mxu0 0.0
        %1795 = vmatpush1.msra.mxu0 0.0
        %1796 = vmatprep.subr.mxu0 0.0
        %1797 = vmatpush1.msra.mxu0 0.0
        %1798 = vmatprep.subr.mxu0 0.0
        %1799 = vmatpush1.msra.mxu0 0.0
        %1800 = vmatprep.subr.mxu0 0.0
        %1801 = vmatpush1.msra.mxu0 0.0
        %1802 = vmatprep.subr.mxu0 0.0
        %1803 = vmatpush1.msra.mxu0 0.0
        %1804 = vmatprep.subr.mxu0 0.0
        %1805 = vmatpush1.msra.mxu0 0.0
        %1806 = vmatprep.subr.mxu0 0.0
        %1807 = vmatpush1.msra.mxu0 0.0
        %1808 = vmatprep.subr.mxu0 0.0
        %1809 = vmatpush1.msra.mxu0 0.0
        %1810 = vmatprep.subr.mxu0 0.0
        %1811 = vmatpush1.msra.mxu0 0.0
        %1812 = vmatprep.subr.mxu0 0.0
        %1813 = vmatpush1.msra.mxu0 0.0
        %1814 = vmatprep.subr.mxu0 0.0
        %1815 = vmatpush1.msra.mxu0 0.0
        %1816 = vmatprep.subr.mxu0 0.0
        %1817 = vmatpush1.msra.mxu0 0.0
        %1818 = vmatprep.subr.mxu0 0.0
        %1819 = vmatpush1.msra.mxu0 0.0
        %1820 = vmatprep.subr.mxu0 0.0
        %1821 = vmatpush1.msra.mxu0 0.0
        %1822 = vmatprep.mubr.f32.mxu0 0.0
        %1823 = vmatmul.mubr.f32.gmra.mrb[0].mxu0 %v1756
        %v1824 = vpop.f32.mrb[0].mxu0
        %v1825 = vadd.f32 %v1753, %v1824
        %v1826 = vpop.f32.mrb[0].mxu0
        %1827 = vdwg.mxu0
        %v1828 = vmax.f32 %v1825, 0.0
        %v1829 = vld [vmem:[%s12] sm:$0x1]
        %v1830 = vld [vmem:[#allocation2] sm:$0x1]
        %1832 = vset.pattern.permute.xlu0 0
        %1833 = vperm.xlu0 %1832, %v1830
        %v1834 = vpop.permute.xlu0 %1833
        %v1836 = vlaneseq
        %v1837 = vshrl.u32 %v1836, 7
        %v1838 = vsub.s32 0, %v1837
        %v1839 = vrot.slane %v1834, %v1838
        %vm1840 = vcmask 130048
        %v1842 = vsel %vm1840, %v1829, 0
        %v1845 = vsel %vm1840, %v1828, 0
        %1847 = vmatprep.subr.mxu0 0.0
        %1848 = vmatpush1.xpose.msra.mxu0 %v1845
        %1849 = vmatprep.subr.mxu0 0.0
        %1850 = vmatpush1.xpose.msra.mxu0 0.0
        %1851 = vmatprep.subr.mxu0 0.0
        %1852 = vmatpush1.xpose.msra.mxu0 0.0
        %1853 = vmatprep.subr.mxu0 0.0
        %1854 = vmatpush1.xpose.msra.mxu0 0.0
        %1855 = vmatprep.subr.mxu0 0.0
        %1856 = vmatpush1.xpose.msra.mxu0 0.0
        %1857 = vmatprep.subr.mxu0 0.0
        %1858 = vmatpush1.xpose.msra.mxu0 0.0
        %1859 = vmatprep.subr.mxu0 0.0
        %1860 = vmatpush1.xpose.msra.mxu0 0.0
        %1861 = vmatprep.subr.mxu0 0.0
        %1862 = vmatpush1.xpose.msra.mxu0 0.0
        %1863 = vmatprep.subr.mxu0 0.0
        %1864 = vmatpush1.xpose.msra.mxu0 0.0
        %1865 = vmatprep.subr.mxu0 0.0
        %1866 = vmatpush1.xpose.msra.mxu0 0.0
        %1867 = vmatprep.subr.mxu0 0.0
        %1868 = vmatpush1.xpose.msra.mxu0 0.0
        %1869 = vmatprep.subr.mxu0 0.0
        %1870 = vmatpush1.xpose.msra.mxu0 0.0
        %1871 = vmatprep.subr.mxu0 0.0
        %1872 = vmatpush1.xpose.msra.mxu0 0.0
        %1873 = vmatprep.subr.mxu0 0.0
        %1874 = vmatpush1.xpose.msra.mxu0 0.0
        %1875 = vmatprep.subr.mxu0 0.0
        %1876 = vmatpush1.xpose.msra.mxu0 0.0
        %1877 = vmatprep.subr.mxu0 0.0
        %1878 = vmatpush1.xpose.msra.mxu0 0.0
        %1879 = vmatprep.subr.mxu0 0.0
        %1880 = vmatpush1.xpose.msra.mxu0 0.0
        %1881 = vmatprep.subr.mxu0 0.0
        %1882 = vmatpush1.xpose.msra.mxu0 0.0
        %1883 = vmatprep.subr.mxu0 0.0
        %1884 = vmatpush1.xpose.msra.mxu0 0.0
        %1885 = vmatprep.subr.mxu0 0.0
        %1886 = vmatpush1.xpose.msra.mxu0 0.0
        %1887 = vmatprep.subr.mxu0 0.0
        %1888 = vmatpush1.xpose.msra.mxu0 0.0
        %1889 = vmatprep.subr.mxu0 0.0
        %1890 = vmatpush1.xpose.msra.mxu0 0.0
        %1891 = vmatprep.subr.mxu0 0.0
        %1892 = vmatpush1.xpose.msra.mxu0 0.0
        %1893 = vmatprep.subr.mxu0 0.0
        %1894 = vmatpush1.xpose.msra.mxu0 0.0
        %1895 = vmatprep.subr.mxu0 0.0
        %1896 = vmatpush1.xpose.msra.mxu0 0.0
        %1897 = vmatprep.subr.mxu0 0.0
        %1898 = vmatpush1.xpose.msra.mxu0 0.0
        %1899 = vmatprep.subr.mxu0 0.0
        %1900 = vmatpush1.xpose.msra.mxu0 0.0
        %1901 = vmatprep.subr.mxu0 0.0
        %1902 = vmatpush1.xpose.msra.mxu0 0.0
        %1903 = vmatprep.subr.mxu0 0.0
        %1904 = vmatpush1.xpose.msra.mxu0 0.0
        %1905 = vmatprep.subr.mxu0 0.0
        %1906 = vmatpush1.xpose.msra.mxu0 0.0
        %1907 = vmatprep.subr.mxu0 0.0
        %1908 = vmatpush1.xpose.msra.mxu0 0.0
        %1909 = vmatprep.subr.mxu0 0.0
        %1910 = vmatpush1.xpose.msra.mxu0 0.0
        %1911 = vmatprep.mubr.f32.mxu0 0.0
        %1912 = vmatmul.mubr.f32.gmra.mrb[0].mxu0 %v1842
        %v1913 = vpop.f32.mrb[0].mxu0
        %v1914 = vadd.f32 %v1839, %v1913
        %v1915 = vpop.f32.mrb[0].mxu0
        %1916 = vdwg.mxu0
        %v1917 = vld [vmem:[%s14] sm:$0xff]
        %v1918 = vld [vmem:[%s15] sm:$0x1]
        %vm1919 = vcmask 64512
        %v1921 = vsel %vm1919, %v1914, 0
        %1923 = vmatprep.subr.mxu0 0.0
        %1924 = vmatpush1.msra.mxu0 %v1917
        %1925 = vmatprep.subr.mxu0 0.0
        %1926 = vmatpush1.msra.mxu0 0.0
        %1927 = vmatprep.subr.mxu0 0.0
        %1928 = vmatpush1.msra.mxu0 0.0
        %1929 = vmatprep.subr.mxu0 0.0
        %1930 = vmatpush1.msra.mxu0 0.0
        %1931 = vmatprep.subr.mxu0 0.0
        %1932 = vmatpush1.msra.mxu0 0.0
        %1933 = vmatprep.subr.mxu0 0.0
        %1934 = vmatpush1.msra.mxu0 0.0
        %1935 = vmatprep.subr.mxu0 0.0
        %1936 = vmatpush1.msra.mxu0 0.0
        %1937 = vmatprep.subr.mxu0 0.0
        %1938 = vmatpush1.msra.mxu0 0.0
        %1939 = vmatprep.subr.mxu0 0.0
        %1940 = vmatpush1.msra.mxu0 0.0
        %1941 = vmatprep.subr.mxu0 0.0
        %1942 = vmatpush1.msra.mxu0 0.0
        %1943 = vmatprep.subr.mxu0 0.0
        %1944 = vmatpush1.msra.mxu0 0.0
        %1945 = vmatprep.subr.mxu0 0.0
        %1946 = vmatpush1.msra.mxu0 0.0
        %1947 = vmatprep.subr.mxu0 0.0
        %1948 = vmatpush1.msra.mxu0 0.0
        %1949 = vmatprep.subr.mxu0 0.0
        %1950 = vmatpush1.msra.mxu0 0.0
        %1951 = vmatprep.subr.mxu0 0.0
        %1952 = vmatpush1.msra.mxu0 0.0
        %1953 = vmatprep.subr.mxu0 0.0
        %1954 = vmatpush1.msra.mxu0 0.0
        %1955 = vmatprep.subr.mxu0 0.0
        %1956 = vmatpush1.msra.mxu0 0.0
        %1957 = vmatprep.subr.mxu0 0.0
        %1958 = vmatpush1.msra.mxu0 0.0
        %1959 = vmatprep.subr.mxu0 0.0
        %1960 = vmatpush1.msra.mxu0 0.0
        %1961 = vmatprep.subr.mxu0 0.0
        %1962 = vmatpush1.msra.mxu0 0.0
        %1963 = vmatprep.subr.mxu0 0.0
        %1964 = vmatpush1.msra.mxu0 0.0
        %1965 = vmatprep.subr.mxu0 0.0
        %1966 = vmatpush1.msra.mxu0 0.0
        %1967 = vmatprep.subr.mxu0 0.0
        %1968 = vmatpush1.msra.mxu0 0.0
        %1969 = vmatprep.subr.mxu0 0.0
        %1970 = vmatpush1.msra.mxu0 0.0
        %1971 = vmatprep.subr.mxu0 0.0
        %1972 = vmatpush1.msra.mxu0 0.0
        %1973 = vmatprep.subr.mxu0 0.0
        %1974 = vmatpush1.msra.mxu0 0.0
        %1975 = vmatprep.subr.mxu0 0.0
        %1976 = vmatpush1.msra.mxu0 0.0
        %1977 = vmatprep.subr.mxu0 0.0
        %1978 = vmatpush1.msra.mxu0 0.0
        %1979 = vmatprep.subr.mxu0 0.0
        %1980 = vmatpush1.msra.mxu0 0.0
        %1981 = vmatprep.subr.mxu0 0.0
        %1982 = vmatpush1.msra.mxu0 0.0
        %1983 = vmatprep.subr.mxu0 0.0
        %1984 = vmatpush1.msra.mxu0 0.0
        %1985 = vmatprep.subr.mxu0 0.0
        %1986 = vmatpush1.msra.mxu0 0.0
        %1987 = vmatprep.mubr.f32.mxu0 0.0
        %1988 = vmatmul.mubr.f32.gmra.mrb[0].mxu0 %v1921
        %v1989 = vpop.f32.mrb[0].mxu0
        %v1990 = vadd.f32 %v1918, %v1989
        %v1991 = vpop.f32.mrb[0].mxu0
        %1992 = vdwg.mxu0
        %v1993 = vmax.f32 %v1990, 0.0
        %v1994 = vld [vmem:[%s16] sm:$0x3f]
        %v1995 = vld [vmem:[%s17] sm:$0x1]
        %vm1996 = vcmask 48128
        %v1998 = vsel %vm1996, %v1993, 0
        %vm2000 = vcmask 1045504
        %v2002 = vsel %vm2000, %v1994, 0
        %2004 = vmatprep.subr.mxu0 0.0
        %2005 = vmatpush1.msra.mxu0 %v2002
        %2006 = vmatprep.subr.mxu0 0.0
        %2007 = vmatpush1.msra.mxu0 0.0
        %2008 = vmatprep.subr.mxu0 0.0
        %2009 = vmatpush1.msra.mxu0 0.0
        %2010 = vmatprep.subr.mxu0 0.0
        %2011 = vmatpush1.msra.mxu0 0.0
        %2012 = vmatprep.subr.mxu0 0.0
        %2013 = vmatpush1.msra.mxu0 0.0
        %2014 = vmatprep.subr.mxu0 0.0
        %2015 = vmatpush1.msra.mxu0 0.0
        %2016 = vmatprep.subr.mxu0 0.0
        %2017 = vmatpush1.msra.mxu0 0.0
        %2018 = vmatprep.subr.mxu0 0.0
        %2019 = vmatpush1.msra.mxu0 0.0
        %2020 = vmatprep.subr.mxu0 0.0
        %2021 = vmatpush1.msra.mxu0 0.0
        %2022 = vmatprep.subr.mxu0 0.0
        %2023 = vmatpush1.msra.mxu0 0.0
        %2024 = vmatprep.subr.mxu0 0.0
        %2025 = vmatpush1.msra.mxu0 0.0
        %2026 = vmatprep.subr.mxu0 0.0
        %2027 = vmatpush1.msra.mxu0 0.0
        %2028 = vmatprep.subr.mxu0 0.0
        %2029 = vmatpush1.msra.mxu0 0.0
        %2030 = vmatprep.subr.mxu0 0.0
        %2031 = vmatpush1.msra.mxu0 0.0
        %2032 = vmatprep.subr.mxu0 0.0
        %2033 = vmatpush1.msra.mxu0 0.0
        %2034 = vmatprep.subr.mxu0 0.0
        %2035 = vmatpush1.msra.mxu0 0.0
        %2036 = vmatprep.subr.mxu0 0.0
        %2037 = vmatpush1.msra.mxu0 0.0
        %2038 = vmatprep.subr.mxu0 0.0
        %2039 = vmatpush1.msra.mxu0 0.0
        %2040 = vmatprep.subr.mxu0 0.0
        %2041 = vmatpush1.msra.mxu0 0.0
        %2042 = vmatprep.subr.mxu0 0.0
        %2043 = vmatpush1.msra.mxu0 0.0
        %2044 = vmatprep.subr.mxu0 0.0
        %2045 = vmatpush1.msra.mxu0 0.0
        %2046 = vmatprep.subr.mxu0 0.0
        %2047 = vmatpush1.msra.mxu0 0.0
        %2048 = vmatprep.subr.mxu0 0.0
        %2049 = vmatpush1.msra.mxu0 0.0
        %2050 = vmatprep.subr.mxu0 0.0
        %2051 = vmatpush1.msra.mxu0 0.0
        %2052 = vmatprep.subr.mxu0 0.0
        %2053 = vmatpush1.msra.mxu0 0.0
        %2054 = vmatprep.subr.mxu0 0.0
        %2055 = vmatpush1.msra.mxu0 0.0
        %2056 = vmatprep.subr.mxu0 0.0
        %2057 = vmatpush1.msra.mxu0 0.0
        %2058 = vmatprep.subr.mxu0 0.0
        %2059 = vmatpush1.msra.mxu0 0.0
        %2060 = vmatprep.subr.mxu0 0.0
        %2061 = vmatpush1.msra.mxu0 0.0
        %2062 = vmatprep.subr.mxu0 0.0
        %2063 = vmatpush1.msra.mxu0 0.0
        %2064 = vmatprep.subr.mxu0 0.0
        %2065 = vmatpush1.msra.mxu0 0.0
        %2066 = vmatprep.subr.mxu0 0.0
        %2067 = vmatpush1.msra.mxu0 0.0
        %2068 = vmatprep.mubr.f32.mxu0 0.0
        %2069 = vmatmul.mubr.f32.gmra.mrb[0].mxu0 %v1998
        %v2070 = vpop.f32.mrb[0].mxu0
        %v2071 = vadd.f32 %v1995, %v2070
        %v2072 = vpop.f32.mrb[0].mxu0
        %2073 = vdwg.mxu0
        %vm2074 = vcmask 24576
        %2075 = vst.msk [vmem:[%s578] sm:$0x1] %vm2074, %v2071
        %s2076 = sand.u32 %s430, 1
        %s2077 = scalar_lea.sflag [#allocation4], %s2076
        %s2078 = sand.u32 %s430, 1
        %s2079 = scalar_lea.vmem [#allocation3], %s2078
        // Predicated region
        $region93: #{tpu_custom_call.1} parent=91 // pred_check
          %p2080 = pneg %p440
        $region94: #{tpu_custom_call.1} parent=91 // pred_check_branch
          %2082 = sbr.rel (%p2080) target = $region96
        $region95: #{tpu_custom_call.1} parent=91 // pred_region
          %s2084 = ssub.s32 16, 16
          %2085 = vsyncadd %s2077, %s2084
          %s2086 = smul.addr %s34, 16
          %s2087 = scalar_lea.hbm %s18, %s2086
          %s2089 = sshll.u32 %s2079, 4
          %s2090 = int_to_ptr.vmem [resolvable:$true] %s2089
          %2092 = dma.vmem_to_hbm [thread:$0]  %s2090, 16, %s2087, %s2077
        $region96: #{tpu_custom_call.1} parent=91 // pred_fallthru
          _
      $region92: #{tpu_custom_call.1} parent=5 // pred_fallthru
        _
      %p2093 = scmp.le.s32.totalorder 2, %s29
      // Predicated region
      $region97: #{tpu_custom_call.1} parent=5 // pred_check
        %p2094 = pneg %p2093
      $region98: #{tpu_custom_call.1} parent=5 // pred_check_branch
        %2096 = sbr.rel (%p2094) target = $region100
      $region99: #{tpu_custom_call.1} parent=5 // pred_region
        %s2097 = ssub.s32 %s29, 2
        // Predicated region
        $region101: #{tpu_custom_call.1} parent=99 // pred_check
          %p2098 = pneg %p446
        $region102: #{tpu_custom_call.1} parent=99 // pred_check_branch
          %2100 = sbr.rel (%p2098) target = $region104
        $region103: #{tpu_custom_call.1} parent=99 // pred_region
          %s2101 = sand.u32 %s431, 1
          %s2102 = scalar_lea.sflag [#allocation4], %s2101
          %s2103 = sand.u32 %s431, 1
          %s2104 = scalar_lea.vmem [#allocation3], %s2103
          %2105 = dma.done %s2102, 16
        $region104: #{tpu_custom_call.1} parent=99 // pred_fallthru
          _
      $region100: #{tpu_custom_call.1} parent=5 // pred_fallthru
        _
    $region6: #{tpu_custom_call.1} parent=1 // loop_footer
      %s33 = sadd.s32 1, %s29
    $region7: #{tpu_custom_call.1} parent=1 // loop_footer_branch
      %28 = sbr.rel target = $region3
    $region8: #{tpu_custom_call.1} parent=1 // loop_exit
      _
    %2106 = vsyncpa [#allocation4], 1
    %s2107 = scalar_lea.sflag [#allocation4], 1
    %2108 = vsyncpa %s2107, 1

</llo_original>
